<compile_context>
chip_gen: v5e
topology: v5e:2x2
jax: 0.10.0
libtpu: 0.0.40
codegen_flags: <defaults>
</compile_context>

<pallas_src>
import math
from functools import partial

import jax
import jax.numpy as jnp
from jax.experimental import pallas as pl
from jax.experimental.pallas import tpu as pltpu

_HP = 128   # hidden width padded to a full lane tile (H = 32 -> 128)
_FP = 8     # raw node-feature width padded to 8 lanes


def _full_spec(shape):
    zeros = (0,) * len(shape)
    return pl.BlockSpec(shape, lambda i, _z=zeros: _z)


# ----------------------------------------------------------------------------
# Stage 1: per-modality GraphConv + folded BN + ReLU + partial pool score.
#   h = relu(A @ (x @ Wrel') + x @ Wroot' + b')      (BN folded into W', b')
#   s = p_row @ h^T                                  (lane-dense (1, N) score)
# ----------------------------------------------------------------------------
def _stage1_kernel(a_ref, x_ref, w_ref, b_ref, p_ref, h_ref, s_ref):
    x = x_ref[0]                                                    # (N, FP) f32
    y = jnp.dot(x, w_ref[0], preferred_element_type=jnp.float32)    # (N, 2*HP)
    y_rel = y[:, :_HP].astype(jnp.bfloat16)
    y_root = y[:, _HP:]
    agg = jnp.dot(a_ref[0], y_rel, preferred_element_type=jnp.float32)  # (N, HP)
    h = jnp.maximum(agg + y_root + b_ref[0], 0.0)                   # (N, HP)
    h_ref[0] = h
    # partial multimodal pool score, lane-dense row; tanh(sum) happens in glue
    s_ref[0] = jnp.dot(p_ref[0], h.T, preferred_element_type=jnp.float32)


def stage1(a, x, w, b, p):
    _, n, fp = x.shape
    hp = b.shape[-1]
    return pl.pallas_call(
        _stage1_kernel,
        grid=(2,),
        in_specs=[
            pl.BlockSpec((1, n, n), lambda i: (i, 0, 0)),
            pl.BlockSpec((1, n, fp), lambda i: (i, 0, 0)),
            pl.BlockSpec((1, fp, 2 * hp), lambda i: (i, 0, 0)),
            pl.BlockSpec((1, 1, hp), lambda i: (i, 0, 0)),
            pl.BlockSpec((1, 1, hp), lambda i: (i, 0, 0)),
        ],
        out_specs=[
            pl.BlockSpec((1, n, hp), lambda i: (i, 0, 0)),
            pl.BlockSpec((1, 1, n), lambda i: (i, 0, 0)),
        ],
        out_shape=[
            jax.ShapeDtypeStruct((2, n, hp), jnp.float32),
            jax.ShapeDtypeStruct((2, 1, n), jnp.float32),
        ],
        compiler_params=pltpu.CompilerParams(dimension_semantics=("parallel",)),
    )(a, x, w, b, p)


# ----------------------------------------------------------------------------
# Stage 2: conv3/conv4 + folded BN + ReLU + masked global max/mean pooling +
#          folded BN5 + lin_double + softmax, for both modalities in one call.
# ----------------------------------------------------------------------------
def _make_stage2_kernel(inv_k):
    def kernel(a_ref, h_ref, gm_ref, mask_ref, w_ref, b_ref, wr_ref, br_ref, o_ref):
        gm = gm_ref[...]        # (N, 1)  tanh(score) * mask gate per node
        mask = mask_ref[...]    # (N, 1)  1.0 on top-k selected nodes
        logits = br_ref[...]    # (1, C)  BN5-folded linear bias
        for m in range(2):
            xm = h_ref[m] * gm                                          # (N, HP)
            y = jnp.dot(xm, w_ref[m], preferred_element_type=jnp.float32)
            y_rel = y[:, :_HP].astype(jnp.bfloat16)
            y_root = y[:, _HP:]
            agg = jnp.dot(a_ref[m], y_rel, preferred_element_type=jnp.float32)
            hm = jnp.maximum(agg + y_root + b_ref[m], 0.0) * mask       # (N, HP)
            # max over selected rows: ReLU output >= 0 and masked rows are 0,
            # so a plain max matches global_max_pool over the k selected nodes
            gmax = jnp.max(hm, axis=0, keepdims=True)                   # (1, HP)
            gmean = jnp.sum(hm, axis=0, keepdims=True) * inv_k          # (1, HP)
            logits = logits + jnp.dot(gmax, wr_ref[2 * m],
                                      preferred_element_type=jnp.float32)
            logits = logits + jnp.dot(gmean, wr_ref[2 * m + 1],
                                      preferred_element_type=jnp.float32)
        z = logits - jnp.max(logits, axis=1, keepdims=True)
        e = jnp.exp(z)
        o_ref[...] = e / jnp.sum(e, axis=1, keepdims=True)
    return kernel


def stage2(a, h, gm_col, mask_col, w, b, w_read, b_read, k):
    c = w_read.shape[-1]
    args = (a, h, gm_col, mask_col, w, b, w_read, b_read)
    return pl.pallas_call(
        _make_stage2_kernel(1.0 / float(k)),
        grid=(1,),
        in_specs=[_full_spec(t.shape) for t in args],
        out_specs=_full_spec((1, c)),
        out_shape=jax.ShapeDtypeStruct((1, c), jnp.float32),
    )(*args)


# ----------------------------------------------------------------------------
# Parameter preparation: BN folding, padding, packing (pure JAX, done once).
# ----------------------------------------------------------------------------
def _pad2(x, rows, cols):
    r, c = x.shape
    return jnp.pad(x, ((0, rows - r), (0, cols - c)))


def _fold_bn_into_conv(w_rel, w_root, b, gamma, beta, mean, var, in_rows, eps=1e-5):
    scale = gamma * jax.lax.rsqrt(var + eps)              # (1, H)
    shift = beta - mean * scale
    w_rel_f = _pad2(w_rel * scale, in_rows, _HP)
    w_root_f = _pad2(w_root * scale, in_rows, _HP)
    b_f = _pad2(b * scale + shift, 1, _HP)
    return jnp.concatenate([w_rel_f, w_root_f], axis=1), b_f   # (rows, 2HP), (1, HP)


def prepare_params(p, h, c):
    w1, b1 = _fold_bn_into_conv(p['w_rel1'], p['w_root1'], p['b1'],
                                p['bn1_g'], p['bn1_b'], p['bn1_m'], p['bn1_v'], _FP)
    w2, b2 = _fold_bn_into_conv(p['w_rel2'], p['w_root2'], p['b2'],
                                p['bn2_g'], p['bn2_b'], p['bn2_m'], p['bn2_v'], _FP)
    w3, b3 = _fold_bn_into_conv(p['w_rel3'], p['w_root3'], p['b3'],
                                p['bn3_g'], p['bn3_b'], p['bn3_m'], p['bn3_v'], _HP)
    w4, b4 = _fold_bn_into_conv(p['w_rel4'], p['w_root4'], p['b4'],
                                p['bn4_g'], p['bn4_b'], p['bn4_m'], p['bn4_v'], _HP)
    # MMTopKPool projections as zero-padded (1, HP) rows
    pool = jnp.stack([_pad2(p['pool_p1'].T, 1, _HP),
                      _pad2(p['pool_p2'].T, 1, _HP)])                    # (2, 1, HP)
    # readout: fold BN5 into lin_double; split rows into [max1|mean1|max2|mean2]
    scale5 = p['bn5_g'] * jax.lax.rsqrt(p['bn5_v'] + 1e-5)               # (1, 4H)
    shift5 = p['bn5_b'] - p['bn5_m'] * scale5
    lin_w = p['lin_w'] * scale5.T                                        # (4H, C)
    b_read = p['lin_b'] + shift5 @ p['lin_w']                            # (1, C)
    w_read = jnp.stack([_pad2(lin_w[i * h:(i + 1) * h], _HP, c) for i in range(4)])
    return {
        'w12': jnp.stack([w1, w2]), 'b12': jnp.stack([b1, b2]),
        'w34': jnp.stack([w3, w4]), 'b34': jnp.stack([b3, b4]),
        'pool': pool, 'w_read': w_read, 'b_read': b_read,
    }


# ----------------------------------------------------------------------------
# Full MMGNN forward (top-k selection / gating glue in XLA, hot path in kernels)
# ----------------------------------------------------------------------------
@partial(jax.jit, static_argnames=('ratio',))
def mmgnn_forward(prep, x1, a1, x2, a2, ratio=0.8):
    n = x1.shape[0]
    x_stack = jnp.stack([_pad2(x1, n, _FP), _pad2(x2, n, _FP)])          # (2, N, FP)
    a_stack = jnp.stack([a1, a2]).astype(jnp.bfloat16)                   # (2, N, N)

    # conv1/conv2 + norm1/norm2 + relu + partial pool score (one fused call)
    h_stack, s_partial = stage1(a_stack, x_stack, prep['w12'], prep['b12'],
                                prep['pool'])

    # MMTopKPool: joint tanh score, shared top-k selection.
    # TODO(synk): jax.lax.top_k tie-breaking may differ from PyG's per-graph topk.
    score_row = jnp.tanh(s_partial[0, 0] + s_partial[1, 0])             # (N,)
    k = int(math.ceil(ratio * n))
    top_vals, perm = jax.lax.top_k(score_row, k)                        # descending
    mask = jnp.zeros((n,), jnp.float32).at[perm].set(1.0)
    gate_mask_col = (score_row * mask)[:, None]                         # (N, 1)
    mask_col = mask[:, None]                                            # (N, 1)

    # conv3/conv4 + norm3/norm4 + relu + global max/mean pool + norm5 +
    # lin_double + softmax (one fused call)
    probs = stage2(a_stack, h_stack, gate_mask_col, mask_col,
                   prep['w34'], prep['b34'], prep['w_read'], prep['b_read'], k)
    return probs, top_vals


# ----------------------------------------------------------------------------
# Deterministic parameter construction (PyTorch-layout, unfused / unfolded)
# ----------------------------------------------------------------------------
def make_params(key, f1, f2, h, c):
    ks = jax.random.split(key, 16)

    def nrm(k, shape, scale=0.1):
        return (scale * jax.random.normal(k, shape)).astype(jnp.float32)

    params = {
        'w_rel1': nrm(ks[0], (f1, h)), 'w_root1': nrm(ks[1], (f1, h)), 'b1': jnp.zeros((1, h), jnp.float32),
        'w_rel2': nrm(ks[2], (f2, h)), 'w_root2': nrm(ks[3], (f2, h)), 'b2': jnp.zeros((1, h), jnp.float32),
        'w_rel3': nrm(ks[4], (h, h)),  'w_root3': nrm(ks[5], (h, h)),  'b3': jnp.zeros((1, h), jnp.float32),
        'w_rel4': nrm(ks[6], (h, h)),  'w_root4': nrm(ks[7], (h, h)),  'b4': jnp.zeros((1, h), jnp.float32),
        'lin_w': nrm(ks[8], (4 * h, c)), 'lin_b': jnp.zeros((1, c), jnp.float32),
    }
    # BatchNorm (PyTorch defaults, eval mode)
    for i, width in zip(range(1, 6), [h, h, h, h, 4 * h]):
        params[f'bn{i}_g'] = jnp.ones((1, width), jnp.float32)
        params[f'bn{i}_b'] = jnp.zeros((1, width), jnp.float32)
        params[f'bn{i}_m'] = jnp.zeros((1, width), jnp.float32)
        params[f'bn{i}_v'] = jnp.ones((1, width), jnp.float32)
    # MMTopKPool projection, normalized by joint weight norm (TopKPooling style)
    p_full = nrm(ks[9], (2 * h, 1), scale=1.0)
    p_full = p_full / jnp.linalg.norm(p_full)
    params['pool_p1'] = p_full[:h]
    params['pool_p2'] = p_full[h:]
    return params


def dense_adj(edge_index, n):
    src, dst = edge_index[0], edge_index[1]
    a = jnp.zeros((n, n), jnp.float32)
    return a.at[dst, src].add(1.0)          # A[i, j] = # edges j -> i


if __name__ == "__main__":
    N, F1, F2, H, C = 16, 4, 6, 32, 3
    E1, E2 = 40, 48
    key = jax.random.PRNGKey(0)
    k_x1, k_x2, k_e1, k_e2, k_p = jax.random.split(key, 5)

    x1 = jax.random.normal(k_x1, (N, F1), jnp.float32)
    x2 = jax.random.normal(k_x2, (N, F2), jnp.float32)
    edge_index1 = jax.random.randint(k_e1, (2, E1), 0, N)
    edge_index2 = jax.random.randint(k_e2, (2, E2), 0, N)
    a1 = dense_adj(edge_index1, N)
    a2 = dense_adj(edge_index2, N)

    params = make_params(k_p, F1, F2, H, C)
    prep = prepare_params(params, H, C)

    probs, score = mmgnn_forward(prep, x1, a1, x2, a2, ratio=0.8)
    probs = jax.block_until_ready(probs)
    score = jax.block_until_ready(score)

    assert probs.shape == (1, C)
    assert jnp.allclose(jnp.sum(probs, axis=1), 1.0, atol=1e-5)
    assert score.shape == (int(math.ceil(0.8 * N)),)
    print("KERNEL_OK")
</pallas_src>

<mosaic_0001>
module attributes {stable_mosaic.version = 11 : i64} {
  func.func @_stage1_kernel(%arg0: i32, %arg1: memref<1x16x16xbf16, #tpu.memory_space<vmem>>, %arg2: memref<1x16x8xf32, #tpu.memory_space<vmem>>, %arg3: memref<1x8x256xf32, #tpu.memory_space<vmem>>, %arg4: memref<1x1x128xf32, #tpu.memory_space<vmem>>, %arg5: memref<1x1x128xf32, #tpu.memory_space<vmem>>, %arg6: memref<1x16x128xf32, #tpu.memory_space<vmem>>, %arg7: memref<1x1x16xf32, #tpu.memory_space<vmem>>) attributes {dimension_semantics = [#tpu.dimension_semantics<parallel>], iteration_bounds = array<i64: 2>, scalar_prefetch = 0 : i64, scratch_operands = 0 : i64, tpu.core_type = #tpu.core_type<tc>, window_params = [{transform_indices = @transform_0, window_bounds = array<i64: 1, 16, 16>}, {transform_indices = @transform_1, window_bounds = array<i64: 1, 16, 8>}, {transform_indices = @transform_2, window_bounds = array<i64: 1, 8, 256>}, {transform_indices = @transform_3, window_bounds = array<i64: 1, 1, 128>}, {transform_indices = @transform_4, window_bounds = array<i64: 1, 1, 128>}, {transform_indices = @transform_5, window_bounds = array<i64: 1, 16, 128>}, {transform_indices = @transform_6, window_bounds = array<i64: 1, 1, 16>}]} {
    %c0 = arith.constant 0 : index
    %c0_0 = arith.constant 0 : index
    %c0_1 = arith.constant 0 : index
    %0 = vector.load %arg2[%c0, %c0_0, %c0_1] : memref<1x16x8xf32, #tpu.memory_space<vmem>>, vector<1x16x8xf32>
    %1 = vector.shape_cast %0 : vector<1x16x8xf32> to vector<16x8xf32>
    %c0_2 = arith.constant 0 : index
    %c0_3 = arith.constant 0 : index
    %c0_4 = arith.constant 0 : index
    %2 = vector.load %arg3[%c0_2, %c0_3, %c0_4] : memref<1x8x256xf32, #tpu.memory_space<vmem>>, vector<1x8x256xf32>
    %3 = vector.shape_cast %2 : vector<1x8x256xf32> to vector<8x256xf32>
    %cst = arith.constant dense<0.000000e+00> : vector<16x256xf32>
    %4 = tpu.matmul %1, %3, %cst {dimension_numbers = #tpu.dot_dimension_numbers<[1], [0], [0], [1], [0, 0, 1, 1], [], []>} : vector<16x8xf32>, vector<8x256xf32>, vector<16x256xf32> -> vector<16x256xf32>
    %5 = vector.extract_strided_slice %4 {offsets = [0, 0], sizes = [16, 128], strides = [1, 1]} : vector<16x256xf32> to vector<16x128xf32>
    %6 = arith.truncf %5 : vector<16x128xf32> to vector<16x128xbf16>
    %7 = vector.extract_strided_slice %4 {offsets = [0, 128], sizes = [16, 128], strides = [1, 1]} : vector<16x256xf32> to vector<16x128xf32>
    %c0_5 = arith.constant 0 : index
    %c0_6 = arith.constant 0 : index
    %c0_7 = arith.constant 0 : index
    %8 = vector.load %arg1[%c0_5, %c0_6, %c0_7] : memref<1x16x16xbf16, #tpu.memory_space<vmem>>, vector<1x16x16xbf16>
    %9 = vector.shape_cast %8 : vector<1x16x16xbf16> to vector<16x16xbf16>
    %cst_8 = arith.constant dense<0.000000e+00> : vector<16x128xf32>
    %10 = tpu.matmul %9, %6, %cst_8 {dimension_numbers = #tpu.dot_dimension_numbers<[1], [0], [0], [1], [0, 0, 1, 1], [], []>} : vector<16x16xbf16>, vector<16x128xbf16>, vector<16x128xf32> -> vector<16x128xf32>
    %11 = arith.addf %10, %7 : vector<16x128xf32>
    %c0_9 = arith.constant 0 : index
    %c0_10 = arith.constant 0 : index
    %c0_11 = arith.constant 0 : index
    %12 = vector.load %arg4[%c0_9, %c0_10, %c0_11] : memref<1x1x128xf32, #tpu.memory_space<vmem>>, vector<1x1x128xf32>
    %13 = vector.shape_cast %12 : vector<1x1x128xf32> to vector<1x128xf32>
    %14 = vector.broadcast %13 : vector<1x128xf32> to vector<16x128xf32>
    %15 = arith.addf %11, %14 : vector<16x128xf32>
    %cst_12 = arith.constant 0.000000e+00 : f32
    %16 = vector.broadcast %cst_12 : f32 to vector<16x128xf32>
    %17 = arith.maximumf %15, %16 : vector<16x128xf32>
    %c0_13 = arith.constant 0 : index
    %c0_14 = arith.constant 0 : index
    %c0_15 = arith.constant 0 : index
    %18 = vector.load %arg6[%c0_13, %c0_14, %c0_15] : memref<1x16x128xf32, #tpu.memory_space<vmem>>, vector<1x16x128xf32>
    %19 = vector.shape_cast %18 : vector<1x16x128xf32> to vector<16x128xf32>
    %20 = vector.shape_cast %17 : vector<16x128xf32> to vector<1x16x128xf32>
    tpu.vector_store %arg6[%c0_13, %c0_14, %c0_15], %20 {strides = array<i32>} : memref<1x16x128xf32, #tpu.memory_space<vmem>>, vector<1x16x128xf32>,
    %c0_16 = arith.constant 0 : index
    %c0_17 = arith.constant 0 : index
    %c0_18 = arith.constant 0 : index
    %21 = vector.load %arg5[%c0_16, %c0_17, %c0_18] : memref<1x1x128xf32, #tpu.memory_space<vmem>>, vector<1x1x128xf32>
    %22 = vector.shape_cast %21 : vector<1x1x128xf32> to vector<1x128xf32>
    %23 = tpu.transpose %17, [1, 0] : vector<16x128xf32> -> vector<128x16xf32>
    %cst_19 = arith.constant dense<0.000000e+00> : vector<1x16xf32>
    %24 = tpu.matmul %22, %23, %cst_19 {dimension_numbers = #tpu.dot_dimension_numbers<[1], [0], [0], [1], [0, 0, 1, 1], [], []>} : vector<1x128xf32>, vector<128x16xf32>, vector<1x16xf32> -> vector<1x16xf32>
    %c0_20 = arith.constant 0 : index
    %c0_21 = arith.constant 0 : index
    %c0_22 = arith.constant 0 : index
    %25 = vector.load %arg7[%c0_20, %c0_21, %c0_22] : memref<1x1x16xf32, #tpu.memory_space<vmem>>, vector<1x1x16xf32>
    %26 = vector.shape_cast %25 : vector<1x1x16xf32> to vector<1x16xf32>
    %27 = vector.shape_cast %24 : vector<1x16xf32> to vector<1x1x16xf32>
    tpu.vector_store %arg7[%c0_20, %c0_21, %c0_22], %27 {strides = array<i32>} : memref<1x1x16xf32, #tpu.memory_space<vmem>>, vector<1x1x16xf32>,
    return
  }
  func.func @transform_0(%arg0: i32) -> (i32, i32, i32) {
    %c0_i32 = arith.constant 0 : i32
    %c0_i32_0 = arith.constant 0 : i32
    %c0_i32_1 = arith.constant 0 : i32
    return %arg0, %c0_i32, %c0_i32_0 : i32, i32, i32
  }
  func.func @transform_1(%arg0: i32) -> (i32, i32, i32) {
    %c0_i32 = arith.constant 0 : i32
    %c0_i32_0 = arith.constant 0 : i32
    %c0_i32_1 = arith.constant 0 : i32
    return %arg0, %c0_i32, %c0_i32_0 : i32, i32, i32
  }
  func.func @transform_2(%arg0: i32) -> (i32, i32, i32) {
    %c0_i32 = arith.constant 0 : i32
    %c0_i32_0 = arith.constant 0 : i32
    %c0_i32_1 = arith.constant 0 : i32
    return %arg0, %c0_i32, %c0_i32_0 : i32, i32, i32
  }
  func.func @transform_3(%arg0: i32) -> (i32, i32, i32) {
    %c0_i32 = arith.constant 0 : i32
    %c0_i32_0 = arith.constant 0 : i32
    %c0_i32_1 = arith.constant 0 : i32
    return %arg0, %c0_i32, %c0_i32_0 : i32, i32, i32
  }
  func.func @transform_4(%arg0: i32) -> (i32, i32, i32) {
    %c0_i32 = arith.constant 0 : i32
    %c0_i32_0 = arith.constant 0 : i32
    %c0_i32_1 = arith.constant 0 : i32
    return %arg0, %c0_i32, %c0_i32_0 : i32, i32, i32
  }
  func.func @transform_5(%arg0: i32) -> (i32, i32, i32) {
    %c0_i32 = arith.constant 0 : i32
    %c0_i32_0 = arith.constant 0 : i32
    %c0_i32_1 = arith.constant 0 : i32
    return %arg0, %c0_i32, %c0_i32_0 : i32, i32, i32
  }
  func.func @transform_6(%arg0: i32) -> (i32, i32, i32) {
    %c0_i32 = arith.constant 0 : i32
    %c0_i32_0 = arith.constant 0 : i32
    %c0_i32_1 = arith.constant 0 : i32
    return %arg0, %c0_i32, %c0_i32_0 : i32, i32, i32
  }
}

module attributes {stable_mosaic.version = 11 : i64} {
  func.func @kernel(%arg0: i32, %arg1: memref<2x16x16xbf16, #tpu.memory_space<vmem>>, %arg2: memref<2x16x128xf32, #tpu.memory_space<vmem>>, %arg3: memref<16x1xf32, #tpu.memory_space<vmem>>, %arg4: memref<16x1xf32, #tpu.memory_space<vmem>>, %arg5: memref<2x128x256xf32, #tpu.memory_space<vmem>>, %arg6: memref<2x1x128xf32, #tpu.memory_space<vmem>>, %arg7: memref<4x128x3xf32, #tpu.memory_space<vmem>>, %arg8: memref<1x3xf32, #tpu.memory_space<vmem>>, %arg9: memref<1x3xf32, #tpu.memory_space<vmem>>) attributes {dimension_semantics = [#tpu.dimension_semantics<arbitrary>], iteration_bounds = array<i64: 1>, scalar_prefetch = 0 : i64, scratch_operands = 0 : i64, tpu.core_type = #tpu.core_type<tc>, window_params = [{pipeline_mode = #tpu.pipeline_mode<synchronous>, transform_indices = @transform_0, window_bounds = array<i64: 2, 16, 16>}, {pipeline_mode = #tpu.pipeline_mode<synchronous>, transform_indices = @transform_1, window_bounds = array<i64: 2, 16, 128>}, {pipeline_mode = #tpu.pipeline_mode<synchronous>, transform_indices = @transform_2, window_bounds = array<i64: 16, 1>}, {pipeline_mode = #tpu.pipeline_mode<synchronous>, transform_indices = @transform_3, window_bounds = array<i64: 16, 1>}, {pipeline_mode = #tpu.pipeline_mode<synchronous>, transform_indices = @transform_4, window_bounds = array<i64: 2, 128, 256>}, {pipeline_mode = #tpu.pipeline_mode<synchronous>, transform_indices = @transform_5, window_bounds = array<i64: 2, 1, 128>}, {pipeline_mode = #tpu.pipeline_mode<synchronous>, transform_indices = @transform_6, window_bounds = array<i64: 4, 128, 3>}, {pipeline_mode = #tpu.pipeline_mode<synchronous>, transform_indices = @transform_7, window_bounds = array<i64: 1, 3>}, {pipeline_mode = #tpu.pipeline_mode<synchronous>, transform_indices = @transform_8, window_bounds = array<i64: 1, 3>}]} {
    %c0 = arith.constant 0 : index
    %c0_0 = arith.constant 0 : index
    %0 = vector.load %arg3[%c0, %c0_0] : memref<16x1xf32, #tpu.memory_space<vmem>>, vector<16x1xf32>
    %c0_1 = arith.constant 0 : index
    %c0_2 = arith.constant 0 : index
    %1 = vector.load %arg4[%c0_1, %c0_2] : memref<16x1xf32, #tpu.memory_space<vmem>>, vector<16x1xf32>
    %c0_3 = arith.constant 0 : index
    %c0_4 = arith.constant 0 : index
    %2 = vector.load %arg8[%c0_3, %c0_4] : memref<1x3xf32, #tpu.memory_space<vmem>>, vector<1x3xf32>
    %c0_5 = arith.constant 0 : index
    %c0_6 = arith.constant 0 : index
    %c0_7 = arith.constant 0 : index
    %3 = vector.load %arg2[%c0_5, %c0_6, %c0_7] : memref<2x16x128xf32, #tpu.memory_space<vmem>>, vector<1x16x128xf32>
    %4 = vector.shape_cast %3 : vector<1x16x128xf32> to vector<16x128xf32>
    %5 = vector.broadcast %0 : vector<16x1xf32> to vector<16x128xf32>
    %6 = arith.mulf %4, %5 : vector<16x128xf32>
    %c0_8 = arith.constant 0 : index
    %c0_9 = arith.constant 0 : index
    %c0_10 = arith.constant 0 : index
    %7 = vector.load %arg5[%c0_8, %c0_9, %c0_10] : memref<2x128x256xf32, #tpu.memory_space<vmem>>, vector<1x128x256xf32>
    %8 = vector.shape_cast %7 : vector<1x128x256xf32> to vector<128x256xf32>
    %cst = arith.constant dense<0.000000e+00> : vector<16x256xf32>
    %9 = tpu.matmul %6, %8, %cst {dimension_numbers = #tpu.dot_dimension_numbers<[1], [0], [0], [1], [0, 0, 1, 1], [], []>} : vector<16x128xf32>, vector<128x256xf32>, vector<16x256xf32> -> vector<16x256xf32>
    %10 = vector.extract_strided_slice %9 {offsets = [0, 0], sizes = [16, 128], strides = [1, 1]} : vector<16x256xf32> to vector<16x128xf32>
    %11 = arith.truncf %10 : vector<16x128xf32> to vector<16x128xbf16>
    %12 = vector.extract_strided_slice %9 {offsets = [0, 128], sizes = [16, 128], strides = [1, 1]} : vector<16x256xf32> to vector<16x128xf32>
    %c0_11 = arith.constant 0 : index
    %c0_12 = arith.constant 0 : index
    %c0_13 = arith.constant 0 : index
    %13 = vector.load %arg1[%c0_11, %c0_12, %c0_13] : memref<2x16x16xbf16, #tpu.memory_space<vmem>>, vector<1x16x16xbf16>
    %14 = vector.shape_cast %13 : vector<1x16x16xbf16> to vector<16x16xbf16>
    %cst_14 = arith.constant dense<0.000000e+00> : vector<16x128xf32>
    %15 = tpu.matmul %14, %11, %cst_14 {dimension_numbers = #tpu.dot_dimension_numbers<[1], [0], [0], [1], [0, 0, 1, 1], [], []>} : vector<16x16xbf16>, vector<16x128xbf16>, vector<16x128xf32> -> vector<16x128xf32>
    %16 = arith.addf %15, %12 : vector<16x128xf32>
    %c0_15 = arith.constant 0 : index
    %c0_16 = arith.constant 0 : index
    %c0_17 = arith.constant 0 : index
    %17 = vector.load %arg6[%c0_15, %c0_16, %c0_17] : memref<2x1x128xf32, #tpu.memory_space<vmem>>, vector<1x1x128xf32>
    %18 = vector.shape_cast %17 : vector<1x1x128xf32> to vector<1x128xf32>
    %19 = vector.broadcast %18 : vector<1x128xf32> to vector<16x128xf32>
    %20 = arith.addf %16, %19 : vector<16x128xf32>
    %cst_18 = arith.constant 0.000000e+00 : f32
    %21 = vector.broadcast %cst_18 : f32 to vector<16x128xf32>
    %22 = arith.maximumf %20, %21 : vector<16x128xf32>
    %23 = vector.broadcast %1 : vector<16x1xf32> to vector<16x128xf32>
    %24 = arith.mulf %22, %23 : vector<16x128xf32>
    %cst_19 = arith.constant dense<0xFF800000> : vector<128xf32>
    %25 = vector.multi_reduction <maximumf>, %24, %cst_19 [0] : vector<16x128xf32> to vector<128xf32>
    %26 = vector.shape_cast %25 : vector<128xf32> to vector<1x128xf32>
    %cst_20 = arith.constant dense<0.000000e+00> : vector<128xf32>
    %27 = vector.multi_reduction <add>, %24, %cst_20 [0] : vector<16x128xf32> to vector<128xf32>
    %28 = vector.shape_cast %27 : vector<128xf32> to vector<1x128xf32>
    %cst_21 = arith.constant 0.0769230798 : f32
    %29 = vector.broadcast %cst_21 : f32 to vector<1x128xf32>
    %30 = arith.mulf %28, %29 : vector<1x128xf32>
    %c0_22 = arith.constant 0 : index
    %c0_23 = arith.constant 0 : index
    %c0_24 = arith.constant 0 : index
    %31 = vector.load %arg7[%c0_22, %c0_23, %c0_24] : memref<4x128x3xf32, #tpu.memory_space<vmem>>, vector<1x128x3xf32>
    %32 = vector.shape_cast %31 : vector<1x128x3xf32> to vector<128x3xf32>
    %cst_25 = arith.constant dense<0.000000e+00> : vector<1x3xf32>
    %33 = tpu.matmul %26, %32, %cst_25 {dimension_numbers = #tpu.dot_dimension_numbers<[1], [0], [0], [1], [0, 0, 1, 1], [], []>} : vector<1x128xf32>, vector<128x3xf32>, vector<1x3xf32> -> vector<1x3xf32>
    %34 = arith.addf %2, %33 : vector<1x3xf32>
    %c1 = arith.constant 1 : index
    %c0_26 = arith.constant 0 : index
    %c0_27 = arith.constant 0 : index
    %35 = vector.load %arg7[%c1, %c0_26, %c0_27] : memref<4x128x3xf32, #tpu.memory_space<vmem>>, vector<1x128x3xf32>
    %36 = vector.shape_cast %35 : vector<1x128x3xf32> to vector<128x3xf32>
    %cst_28 = arith.constant dense<0.000000e+00> : vector<1x3xf32>
    %37 = tpu.matmul %30, %36, %cst_28 {dimension_numbers = #tpu.dot_dimension_numbers<[1], [0], [0], [1], [0, 0, 1, 1], [], []>} : vector<1x128xf32>, vector<128x3xf32>, vector<1x3xf32> -> vector<1x3xf32>
    %38 = arith.addf %34, %37 : vector<1x3xf32>
    %c1_29 = arith.constant 1 : index
    %c0_30 = arith.constant 0 : index
    %c0_31 = arith.constant 0 : index
    %39 = vector.load %arg2[%c1_29, %c0_30, %c0_31] : memref<2x16x128xf32, #tpu.memory_space<vmem>>, vector<1x16x128xf32>
    %40 = vector.shape_cast %39 : vector<1x16x128xf32> to vector<16x128xf32>
    %41 = vector.broadcast %0 : vector<16x1xf32> to vector<16x128xf32>
    %42 = arith.mulf %40, %41 : vector<16x128xf32>
    %c1_32 = arith.constant 1 : index
    %c0_33 = arith.constant 0 : index
    %c0_34 = arith.constant 0 : index
    %43 = vector.load %arg5[%c1_32, %c0_33, %c0_34] : memref<2x128x256xf32, #tpu.memory_space<vmem>>, vector<1x128x256xf32>
    %44 = vector.shape_cast %43 : vector<1x128x256xf32> to vector<128x256xf32>
    %cst_35 = arith.constant dense<0.000000e+00> : vector<16x256xf32>
    %45 = tpu.matmul %42, %44, %cst_35 {dimension_numbers = #tpu.dot_dimension_numbers<[1], [0], [0], [1], [0, 0, 1, 1], [], []>} : vector<16x128xf32>, vector<128x256xf32>, vector<16x256xf32> -> vector<16x256xf32>
    %46 = vector.extract_strided_slice %45 {offsets = [0, 0], sizes = [16, 128], strides = [1, 1]} : vector<16x256xf32> to vector<16x128xf32>
    %47 = arith.truncf %46 : vector<16x128xf32> to vector<16x128xbf16>
    %48 = vector.extract_strided_slice %45 {offsets = [0, 128], sizes = [16, 128], strides = [1, 1]} : vector<16x256xf32> to vector<16x128xf32>
    %c1_36 = arith.constant 1 : index
    %c0_37 = arith.constant 0 : index
    %c0_38 = arith.constant 0 : index
    %49 = vector.load %arg1[%c1_36, %c0_37, %c0_38] : memref<2x16x16xbf16, #tpu.memory_space<vmem>>, vector<1x16x16xbf16>
    %50 = vector.shape_cast %49 : vector<1x16x16xbf16> to vector<16x16xbf16>
    %cst_39 = arith.constant dense<0.000000e+00> : vector<16x128xf32>
    %51 = tpu.matmul %50, %47, %cst_39 {dimension_numbers = #tpu.dot_dimension_numbers<[1], [0], [0], [1], [0, 0, 1, 1], [], []>} : vector<16x16xbf16>, vector<16x128xbf16>, vector<16x128xf32> -> vector<16x128xf32>
    %52 = arith.addf %51, %48 : vector<16x128xf32>
    %c1_40 = arith.constant 1 : index
    %c0_41 = arith.constant 0 : index
    %c0_42 = arith.constant 0 : index
    %53 = vector.load %arg6[%c1_40, %c0_41, %c0_42] : memref<2x1x128xf32, #tpu.memory_space<vmem>>, vector<1x1x128xf32>
    %54 = vector.shape_cast %53 : vector<1x1x128xf32> to vector<1x128xf32>
    %55 = vector.broadcast %54 : vector<1x128xf32> to vector<16x128xf32>
    %56 = arith.addf %52, %55 : vector<16x128xf32>
    %cst_43 = arith.constant 0.000000e+00 : f32
    %57 = vector.broadcast %cst_43 : f32 to vector<16x128xf32>
    %58 = arith.maximumf %56, %57 : vector<16x128xf32>
    %59 = vector.broadcast %1 : vector<16x1xf32> to vector<16x128xf32>
    %60 = arith.mulf %58, %59 : vector<16x128xf32>
    %cst_44 = arith.constant dense<0xFF800000> : vector<128xf32>
    %61 = vector.multi_reduction <maximumf>, %60, %cst_44 [0] : vector<16x128xf32> to vector<128xf32>
    %62 = vector.shape_cast %61 : vector<128xf32> to vector<1x128xf32>
    %cst_45 = arith.constant dense<0.000000e+00> : vector<128xf32>
    %63 = vector.multi_reduction <add>, %60, %cst_45 [0] : vector<16x128xf32> to vector<128xf32>
    %64 = vector.shape_cast %63 : vector<128xf32> to vector<1x128xf32>
    %cst_46 = arith.constant 0.0769230798 : f32
    %65 = vector.broadcast %cst_46 : f32 to vector<1x128xf32>
    %66 = arith.mulf %64, %65 : vector<1x128xf32>
    %c2 = arith.constant 2 : index
    %c0_47 = arith.constant 0 : index
    %c0_48 = arith.constant 0 : index
    %67 = vector.load %arg7[%c2, %c0_47, %c0_48] : memref<4x128x3xf32, #tpu.memory_space<vmem>>, vector<1x128x3xf32>
    %68 = vector.shape_cast %67 : vector<1x128x3xf32> to vector<128x3xf32>
    %cst_49 = arith.constant dense<0.000000e+00> : vector<1x3xf32>
    %69 = tpu.matmul %62, %68, %cst_49 {dimension_numbers = #tpu.dot_dimension_numbers<[1], [0], [0], [1], [0, 0, 1, 1], [], []>} : vector<1x128xf32>, vector<128x3xf32>, vector<1x3xf32> -> vector<1x3xf32>
    %70 = arith.addf %38, %69 : vector<1x3xf32>
    %c3 = arith.constant 3 : index
    %c0_50 = arith.constant 0 : index
    %c0_51 = arith.constant 0 : index
    %71 = vector.load %arg7[%c3, %c0_50, %c0_51] : memref<4x128x3xf32, #tpu.memory_space<vmem>>, vector<1x128x3xf32>
    %72 = vector.shape_cast %71 : vector<1x128x3xf32> to vector<128x3xf32>
    %cst_52 = arith.constant dense<0.000000e+00> : vector<1x3xf32>
    %73 = tpu.matmul %66, %72, %cst_52 {dimension_numbers = #tpu.dot_dimension_numbers<[1], [0], [0], [1], [0, 0, 1, 1], [], []>} : vector<1x128xf32>, vector<128x3xf32>, vector<1x3xf32> -> vector<1x3xf32>
    %74 = arith.addf %70, %73 : vector<1x3xf32>
    %cst_53 = arith.constant dense<0xFF800000> : vector<1xf32>
    %75 = vector.multi_reduction <maximumf>, %74, %cst_53 [1] : vector<1x3xf32> to vector<1xf32>
    %76 = vector.shape_cast %75 : vector<1xf32> to vector<1x1xf32>
    %77 = vector.broadcast %76 : vector<1x1xf32> to vector<1x3xf32>
    %78 = arith.subf %74, %77 : vector<1x3xf32>
    %79 = math.exp %78 : vector<1x3xf32>
    %cst_54 = arith.constant dense<0.000000e+00> : vector<1xf32>
    %80 = vector.multi_reduction <add>, %79, %cst_54 [1] : vector<1x3xf32> to vector<1xf32>
    %81 = vector.shape_cast %80 : vector<1xf32> to vector<1x1xf32>
    %82 = vector.broadcast %81 : vector<1x1xf32> to vector<1x3xf32>
    %83 = arith.divf %79, %82 : vector<1x3xf32>
    %c0_55 = arith.constant 0 : index
    %c0_56 = arith.constant 0 : index
    %84 = vector.load %arg9[%c0_55, %c0_56] : memref<1x3xf32, #tpu.memory_space<vmem>>, vector<1x3xf32>
    tpu.vector_store %arg9[%c0_55, %c0_56], %83 {strides = array<i32>} : memref<1x3xf32, #tpu.memory_space<vmem>>, vector<1x3xf32>,
    return
  }
  func.func @transform_0(%arg0: i32) -> (i32, i32, i32) {
    %c0_i32 = arith.constant 0 : i32
    %c0_i32_0 = arith.constant 0 : i32
    %c0_i32_1 = arith.constant 0 : i32
    %c0_i32_2 = arith.constant 0 : i32
    return %c0_i32, %c0_i32_0, %c0_i32_1 : i32, i32, i32
  }
  func.func @transform_1(%arg0: i32) -> (i32, i32, i32) {
    %c0_i32 = arith.constant 0 : i32
    %c0_i32_0 = arith.constant 0 : i32
    %c0_i32_1 = arith.constant 0 : i32
    %c0_i32_2 = arith.constant 0 : i32
    return %c0_i32, %c0_i32_0, %c0_i32_1 : i32, i32, i32
  }
  func.func @transform_2(%arg0: i32) -> (i32, i32) {
    %c0_i32 = arith.constant 0 : i32
    %c0_i32_0 = arith.constant 0 : i32
    %c0_i32_1 = arith.constant 0 : i32
    return %c0_i32, %c0_i32_0 : i32, i32
  }
  func.func @transform_3(%arg0: i32) -> (i32, i32) {
    %c0_i32 = arith.constant 0 : i32
    %c0_i32_0 = arith.constant 0 : i32
    %c0_i32_1 = arith.constant 0 : i32
    return %c0_i32, %c0_i32_0 : i32, i32
  }
  func.func @transform_4(%arg0: i32) -> (i32, i32, i32) {
    %c0_i32 = arith.constant 0 : i32
    %c0_i32_0 = arith.constant 0 : i32
    %c0_i32_1 = arith.constant 0 : i32
    %c0_i32_2 = arith.constant 0 : i32
    return %c0_i32, %c0_i32_0, %c0_i32_1 : i32, i32, i32
  }
  func.func @transform_5(%arg0: i32) -> (i32, i32, i32) {
    %c0_i32 = arith.constant 0 : i32
    %c0_i32_0 = arith.constant 0 : i32
    %c0_i32_1 = arith.constant 0 : i32
    %c0_i32_2 = arith.constant 0 : i32
    return %c0_i32, %c0_i32_0, %c0_i32_1 : i32, i32, i32
  }
  func.func @transform_6(%arg0: i32) -> (i32, i32, i32) {
    %c0_i32 = arith.constant 0 : i32
    %c0_i32_0 = arith.constant 0 : i32
    %c0_i32_1 = arith.constant 0 : i32
    %c0_i32_2 = arith.constant 0 : i32
    return %c0_i32, %c0_i32_0, %c0_i32_1 : i32, i32, i32
  }
  func.func @transform_7(%arg0: i32) -> (i32, i32) {
    %c0_i32 = arith.constant 0 : i32
    %c0_i32_0 = arith.constant 0 : i32
    %c0_i32_1 = arith.constant 0 : i32
    return %c0_i32, %c0_i32_0 : i32, i32
  }
  func.func @transform_8(%arg0: i32) -> (i32, i32) {
    %c0_i32 = arith.constant 0 : i32
    %c0_i32_0 = arith.constant 0 : i32
    %c0_i32_1 = arith.constant 0 : i32
    return %c0_i32, %c0_i32_0 : i32, i32
  }
}

</mosaic_0001>

<llo_original>
// kernel: mmgnn_forward.2
$region0: #{mmgnn_forward.2}
  #allocation0 [shape = 'u32[]', space=smem, size = 0x4, offset = 0x4, fixed_abs, tag = 'smem constant byte address 0x4 - core index']
  #allocation1 [shape = 'u32[72,128]{1,0:T(1,128)}', space=vmem, size = 0x9000, scoped, tag = 'internal scratch']
  %s0 = inlined_call_operand.vmem [shape: bf16[2,16,16], index: 0, kind: input, shape index: {}]
  %s1 = inlined_call_operand.vmem [shape: f32[2,16,8], index: 1, kind: input, shape index: {}]
  %s2 = inlined_call_operand.vmem [shape: f32[2,8,256], index: 2, kind: input, shape index: {}]
  %s3 = inlined_call_operand.vmem [shape: f32[2,1,128], index: 3, kind: input, shape index: {}]
  %s4 = inlined_call_operand.vmem [shape: f32[2,1,128], index: 4, kind: input, shape index: {}]
  %s5 = inlined_call_operand.vmem [shape: f32[2,16,128], index: 5, kind: output, shape index: {0}]
  %s6 = inlined_call_operand.vmem [shape: f32[2,1,16], index: 6, kind: output, shape index: {1}]
  %7 = xla_tuple %s5, %s6
  %s8 = sld [smem:[#allocation0]]
  $region61: #{mmgnn_forward.2} parent=0
    _
  %s10 = ssub.s32 1, %s8
  %s11 = scalar_select 0, %s10, %s8
  loop: start=0, step=1, limit=4
  $region2: #{mmgnn_forward.2} parent=0 // loop_pre_header
    _
  $region3: #{mmgnn_forward.2} parent=0 // loop_header
    %s13 = sphi 0, %s17
    %p14 = scmp.ge.s32.totalorder %s13, 4
    %s23 = sphi 0, %s25
    %s26 = sphi 0, %s23
    %s27 = sphi 0, %s26
    %s43 = sphi 0, %s27
    %s49 = sphi 0, %s51
    %s52 = sphi 0, %s49
    %s53 = sphi 0, %s52
    %s69 = sphi 0, %s53
    %s75 = sphi 0, %s77
    %s78 = sphi 0, %s75
    %s79 = sphi 0, %s78
    %s95 = sphi 0, %s79
    %s101 = sphi 0, %s103
    %s104 = sphi 0, %s101
    %s105 = sphi 0, %s104
    %s121 = sphi 0, %s105
    %s127 = sphi 0, %s129
    %s130 = sphi 0, %s127
    %s131 = sphi 0, %s130
    %s147 = sphi 0, %s131
    %s153 = sphi 0, %s155
    %s156 = sphi 0, %s153
    %s157 = sphi 0, %s156
    %s173 = sphi 0, %s157
    %s179 = sphi 0, %s181
    %s182 = sphi 0, %s179
    %s183 = sphi 0, %s182
    %s199 = sphi 0, %s183
  $region4: #{mmgnn_forward.2} parent=0 // loop_header_branch
    %16 = sbr.rel (%p14) target = $region8
  $region5: #{mmgnn_forward.2} parent=0 // loop_body
    %s18 = ssub.s32 %s13, 1
    %s19 = ssub.s32 %s13, 2
    %s20 = sadd.s32 %s13, 1
    %s21 = ssub.s32 %s13, %s20
    %p22 = scmp.eq.s32.totalorder %s21, 0
    %s24 = sadd.s32 %s23, 1
    %s25 = scalar_select %p22, %s23, %s24
    %p28 = pneg %p22
    %p29 = scmp.eq.s32.totalorder %s13, 1
    %p30 = por %p28, %p29
    %p31 = scmp.ne.s32.totalorder %s23, %s26
    %p32 = scmp.eq.s32.totalorder %s13, 0
    %p33 = por %p31, %p32
    %p34 = scmp.ne.s32.totalorder %s23, %s26
    %p35 = scmp.eq.s32.totalorder %s18, 1
    %p36 = por %p34, %p35
    %p37 = scmp.ne.s32.totalorder %s26, %s27
    %p38 = scmp.eq.s32.totalorder %s18, 0
    %p39 = por %p37, %p38
    %p40 = scmp.ne.s32.totalorder %s26, %s27
    %p41 = scmp.eq.s32.totalorder %s19, 1
    %p42 = por %p40, %p41
    %p44 = scmp.ne.s32.totalorder %s27, %s43
    %p45 = scmp.eq.s32.totalorder %s19, 0
    %p46 = por %p44, %p45
    %s47 = ssub.s32 %s13, %s20
    %p48 = scmp.eq.s32.totalorder %s47, 0
    %s50 = sadd.s32 %s49, 1
    %s51 = scalar_select %p48, %s49, %s50
    %p54 = pneg %p48
    %p55 = scmp.eq.s32.totalorder %s13, 1
    %p56 = por %p54, %p55
    %p57 = scmp.ne.s32.totalorder %s49, %s52
    %p58 = scmp.eq.s32.totalorder %s13, 0
    %p59 = por %p57, %p58
    %p60 = scmp.ne.s32.totalorder %s49, %s52
    %p61 = scmp.eq.s32.totalorder %s18, 1
    %p62 = por %p60, %p61
    %p63 = scmp.ne.s32.totalorder %s52, %s53
    %p64 = scmp.eq.s32.totalorder %s18, 0
    %p65 = por %p63, %p64
    %p66 = scmp.ne.s32.totalorder %s52, %s53
    %p67 = scmp.eq.s32.totalorder %s19, 1
    %p68 = por %p66, %p67
    %p70 = scmp.ne.s32.totalorder %s53, %s69
    %p71 = scmp.eq.s32.totalorder %s19, 0
    %p72 = por %p70, %p71
    %s73 = ssub.s32 %s13, %s20
    %p74 = scmp.eq.s32.totalorder %s73, 0
    %s76 = sadd.s32 %s75, 1
    %s77 = scalar_select %p74, %s75, %s76
    %p80 = pneg %p74
    %p81 = scmp.eq.s32.totalorder %s13, 1
    %p82 = por %p80, %p81
    %p83 = scmp.ne.s32.totalorder %s75, %s78
    %p84 = scmp.eq.s32.totalorder %s13, 0
    %p85 = por %p83, %p84
    %p86 = scmp.ne.s32.totalorder %s75, %s78
    %p87 = scmp.eq.s32.totalorder %s18, 1
    %p88 = por %p86, %p87
    %p89 = scmp.ne.s32.totalorder %s78, %s79
    %p90 = scmp.eq.s32.totalorder %s18, 0
    %p91 = por %p89, %p90
    %p92 = scmp.ne.s32.totalorder %s78, %s79
    %p93 = scmp.eq.s32.totalorder %s19, 1
    %p94 = por %p92, %p93
    %p96 = scmp.ne.s32.totalorder %s79, %s95
    %p97 = scmp.eq.s32.totalorder %s19, 0
    %p98 = por %p96, %p97
    %s99 = ssub.s32 %s13, %s20
    %p100 = scmp.eq.s32.totalorder %s99, 0
    %s102 = sadd.s32 %s101, 1
    %s103 = scalar_select %p100, %s101, %s102
    %p106 = pneg %p100
    %p107 = scmp.eq.s32.totalorder %s13, 1
    %p108 = por %p106, %p107
    %p109 = scmp.ne.s32.totalorder %s101, %s104
    %p110 = scmp.eq.s32.totalorder %s13, 0
    %p111 = por %p109, %p110
    %p112 = scmp.ne.s32.totalorder %s101, %s104
    %p113 = scmp.eq.s32.totalorder %s18, 1
    %p114 = por %p112, %p113
    %p115 = scmp.ne.s32.totalorder %s104, %s105
    %p116 = scmp.eq.s32.totalorder %s18, 0
    %p117 = por %p115, %p116
    %p118 = scmp.ne.s32.totalorder %s104, %s105
    %p119 = scmp.eq.s32.totalorder %s19, 1
    %p120 = por %p118, %p119
    %p122 = scmp.ne.s32.totalorder %s105, %s121
    %p123 = scmp.eq.s32.totalorder %s19, 0
    %p124 = por %p122, %p123
    %s125 = ssub.s32 %s13, %s20
    %p126 = scmp.eq.s32.totalorder %s125, 0
    %s128 = sadd.s32 %s127, 1
    %s129 = scalar_select %p126, %s127, %s128
    %p132 = pneg %p126
    %p133 = scmp.eq.s32.totalorder %s13, 1
    %p134 = por %p132, %p133
    %p135 = scmp.ne.s32.totalorder %s127, %s130
    %p136 = scmp.eq.s32.totalorder %s13, 0
    %p137 = por %p135, %p136
    %p138 = scmp.ne.s32.totalorder %s127, %s130
    %p139 = scmp.eq.s32.totalorder %s18, 1
    %p140 = por %p138, %p139
    %p141 = scmp.ne.s32.totalorder %s130, %s131
    %p142 = scmp.eq.s32.totalorder %s18, 0
    %p143 = por %p141, %p142
    %p144 = scmp.ne.s32.totalorder %s130, %s131
    %p145 = scmp.eq.s32.totalorder %s19, 1
    %p146 = por %p144, %p145
    %p148 = scmp.ne.s32.totalorder %s131, %s147
    %p149 = scmp.eq.s32.totalorder %s19, 0
    %p150 = por %p148, %p149
    %s151 = ssub.s32 %s13, %s20
    %p152 = scmp.eq.s32.totalorder %s151, 0
    %s154 = sadd.s32 %s153, 1
    %s155 = scalar_select %p152, %s153, %s154
    %p158 = pneg %p152
    %p159 = scmp.eq.s32.totalorder %s13, 1
    %p160 = por %p158, %p159
    %p161 = scmp.ne.s32.totalorder %s153, %s156
    %p162 = scmp.eq.s32.totalorder %s13, 0
    %p163 = por %p161, %p162
    %p164 = scmp.ne.s32.totalorder %s153, %s156
    %p165 = scmp.eq.s32.totalorder %s18, 1
    %p166 = por %p164, %p165
    %p167 = scmp.ne.s32.totalorder %s156, %s157
    %p168 = scmp.eq.s32.totalorder %s18, 0
    %p169 = por %p167, %p168
    %p170 = scmp.ne.s32.totalorder %s156, %s157
    %p171 = scmp.eq.s32.totalorder %s19, 1
    %p172 = por %p170, %p171
    %p174 = scmp.ne.s32.totalorder %s157, %s173
    %p175 = scmp.eq.s32.totalorder %s19, 0
    %p176 = por %p174, %p175
    %s177 = ssub.s32 %s13, %s20
    %p178 = scmp.eq.s32.totalorder %s177, 0
    %s180 = sadd.s32 %s179, 1
    %s181 = scalar_select %p178, %s179, %s180
    %p184 = pneg %p178
    %p185 = scmp.eq.s32.totalorder %s13, 1
    %p186 = por %p184, %p185
    %p187 = scmp.ne.s32.totalorder %s179, %s182
    %p188 = scmp.eq.s32.totalorder %s13, 0
    %p189 = por %p187, %p188
    %p190 = scmp.ne.s32.totalorder %s179, %s182
    %p191 = scmp.eq.s32.totalorder %s18, 1
    %p192 = por %p190, %p191
    %p193 = scmp.ne.s32.totalorder %s182, %s183
    %p194 = scmp.eq.s32.totalorder %s18, 0
    %p195 = por %p193, %p194
    %p196 = scmp.ne.s32.totalorder %s182, %s183
    %p197 = scmp.eq.s32.totalorder %s19, 1
    %p198 = por %p196, %p197
    %p200 = scmp.ne.s32.totalorder %s183, %s199
    %p201 = scmp.eq.s32.totalorder %s19, 0
    %p202 = por %p200, %p201
    %p203 = scmp.le.s32.totalorder 1, %s13
    %p204 = scmp.lt.s32.totalorder %s13, 3
    %p205 = pnand %p203, %p204
    %p206 = pneg %p205
    // Predicated region
    $region9: #{mmgnn_forward.2} parent=5 // pred_check
      _
    $region10: #{mmgnn_forward.2} parent=5 // pred_check_branch
      %208 = sbr.rel (%p205) target = $region12
    $region11: #{mmgnn_forward.2} parent=5 // pred_region
      %s209 = ssub.s32 %s13, 1
    $region12: #{mmgnn_forward.2} parent=5 // pred_fallthru
      _
    %p210 = scmp.lt.s32.totalorder %s13, 2
    // Predicated region
    $region13: #{mmgnn_forward.2} parent=5 // pred_check
      %p211 = pneg %p210
    $region14: #{mmgnn_forward.2} parent=5 // pred_check_branch
      %213 = sbr.rel (%p211) target = $region16
    $region15: #{mmgnn_forward.2} parent=5 // pred_region
      // Predicated region
      $region17: #{mmgnn_forward.2} parent=15 // pred_check
        %p214 = pneg %p33
      $region18: #{mmgnn_forward.2} parent=15 // pred_check_branch
        %216 = sbr.rel (%p214) target = $region20
      $region19: #{mmgnn_forward.2} parent=15 // pred_region
        %p217 = scmp.lt.s32.totalorder %s13, 1
        %s218 = scalar_select %p217, %s13, 1
        %s219 = smul.addr %s218, 2
        %s220 = smul.addr %s219, 4
        %s221 = scalar_lea.vmem %s0, %s220
      $region20: #{mmgnn_forward.2} parent=15 // pred_fallthru
        _
      // Predicated region
      $region21: #{mmgnn_forward.2} parent=15 // pred_check
        %p222 = pneg %p59
      $region22: #{mmgnn_forward.2} parent=15 // pred_check_branch
        %224 = sbr.rel (%p222) target = $region24
      $region23: #{mmgnn_forward.2} parent=15 // pred_region
        %p225 = scmp.lt.s32.totalorder %s13, 1
        %s226 = scalar_select %p225, %s13, 1
        %s227 = smul.addr %s226, 2
        %s228 = smul.addr %s227, 8
        %s229 = scalar_lea.vmem %s1, %s228
      $region24: #{mmgnn_forward.2} parent=15 // pred_fallthru
        _
      // Predicated region
      $region25: #{mmgnn_forward.2} parent=15 // pred_check
        %p230 = pneg %p85
      $region26: #{mmgnn_forward.2} parent=15 // pred_check_branch
        %232 = sbr.rel (%p230) target = $region28
      $region27: #{mmgnn_forward.2} parent=15 // pred_region
        %p233 = scmp.lt.s32.totalorder %s13, 1
        %s234 = scalar_select %p233, %s13, 1
        %s235 = smul.addr %s234, 2
        %s236 = smul.addr %s235, 8
        %s237 = scalar_lea.vmem %s2, %s236
      $region28: #{mmgnn_forward.2} parent=15 // pred_fallthru
        _
      // Predicated region
      $region29: #{mmgnn_forward.2} parent=15 // pred_check
        %p238 = pneg %p111
      $region30: #{mmgnn_forward.2} parent=15 // pred_check_branch
        %240 = sbr.rel (%p238) target = $region32
      $region31: #{mmgnn_forward.2} parent=15 // pred_region
        %p241 = scmp.lt.s32.totalorder %s13, 1
        %s242 = scalar_select %p241, %s13, 1
        %s243 = scalar_lea.vmem %s3, %s242
      $region32: #{mmgnn_forward.2} parent=15 // pred_fallthru
        _
      // Predicated region
      $region33: #{mmgnn_forward.2} parent=15 // pred_check
        %p244 = pneg %p137
      $region34: #{mmgnn_forward.2} parent=15 // pred_check_branch
        %246 = sbr.rel (%p244) target = $region36
      $region35: #{mmgnn_forward.2} parent=15 // pred_region
        %p247 = scmp.lt.s32.totalorder %s13, 1
        %s248 = scalar_select %p247, %s13, 1
        %s249 = scalar_lea.vmem %s4, %s248
      $region36: #{mmgnn_forward.2} parent=15 // pred_fallthru
        _
    $region16: #{mmgnn_forward.2} parent=5 // pred_fallthru
      _
    %p250 = scmp.le.s32.totalorder 1, %s13
    %p251 = scmp.lt.s32.totalorder %s13, 3
    %p252 = pnand %p250, %p251
    %p253 = pneg %p252
    // Predicated region
    $region37: #{mmgnn_forward.2} parent=5 // pred_check
      _
    $region38: #{mmgnn_forward.2} parent=5 // pred_check_branch
      %255 = sbr.rel (%p252) target = $region40
    $region39: #{mmgnn_forward.2} parent=5 // pred_region
      %s256 = ssub.s32 %s13, 1
      %p257 = scmp.lt.s32.totalorder %s18, 1
      %s258 = scalar_select %p257, %s18, 1
      %s259 = smul.addr %s258, 2
      %s260 = smul.addr %s259, 4
      %s261 = scalar_lea.vmem %s0, %s260
      %p262 = pneg %p39
      %p263 = pneg %p36
      %p264 = scmp.lt.s32.totalorder %s18, 1
      %s265 = scalar_select %p264, %s18, 1
      %s266 = smul.addr %s265, 2
      %s267 = smul.addr %s266, 8
      %s268 = scalar_lea.vmem %s1, %s267
      %p269 = pneg %p65
      %p270 = pneg %p62
      %p271 = scmp.lt.s32.totalorder %s18, 1
      %s272 = scalar_select %p271, %s18, 1
      %s273 = smul.addr %s272, 2
      %s274 = smul.addr %s273, 8
      %s275 = scalar_lea.vmem %s2, %s274
      %p276 = pneg %p91
      %p277 = pneg %p88
      %p278 = scmp.lt.s32.totalorder %s18, 1
      %s279 = scalar_select %p278, %s18, 1
      %s280 = scalar_lea.vmem %s3, %s279
      %p281 = pneg %p117
      %p282 = pneg %p114
      %p283 = scmp.lt.s32.totalorder %s18, 1
      %s284 = scalar_select %p283, %s18, 1
      %s285 = scalar_lea.vmem %s4, %s284
      %p286 = pneg %p143
      %p287 = pneg %p140
      %p288 = pneg %p169
      %p289 = pneg %p166
      %p290 = scmp.lt.s32.totalorder %s18, 1
      %s291 = scalar_select %p290, %s18, 1
      %s292 = smul.addr %s291, 2
      %s293 = smul.addr %s292, 8
      %s294 = scalar_lea.vmem %s5, %s293
      %p295 = pneg %p195
      %p296 = pneg %p192
      %p297 = scmp.lt.s32.totalorder %s18, 1
      %s298 = scalar_select %p297, %s18, 1
      %s299 = scalar_lea.vmem %s6, %s298
      %p300 = scmp.lt.s32.totalorder %s18, 1
      %s301 = scalar_select %p300, %s18, 1
      %s302 = smul.addr %s301, 2
      %s303 = smul.addr %s302, 4
      %s304 = scalar_lea.vmem %s0, %s303
      %p305 = scmp.lt.s32.totalorder %s18, 1
      %s306 = scalar_select %p305, %s18, 1
      %s307 = smul.addr %s306, 2
      %s308 = smul.addr %s307, 8
      %s309 = scalar_lea.vmem %s1, %s308
      %p310 = scmp.lt.s32.totalorder %s18, 1
      %s311 = scalar_select %p310, %s18, 1
      %s312 = smul.addr %s311, 2
      %s313 = smul.addr %s312, 8
      %s314 = scalar_lea.vmem %s2, %s313
      %p315 = scmp.lt.s32.totalorder %s18, 1
      %s316 = scalar_select %p315, %s18, 1
      %s317 = scalar_lea.vmem %s3, %s316
      %p318 = scmp.lt.s32.totalorder %s18, 1
      %s319 = scalar_select %p318, %s18, 1
      %s320 = scalar_lea.vmem %s4, %s319
      %p321 = scmp.lt.s32.totalorder %s18, 1
      %s322 = scalar_select %p321, %s18, 1
      %s323 = smul.addr %s322, 2
      %s324 = smul.addr %s323, 8
      %s325 = scalar_lea.vmem %s5, %s324
      %p326 = scmp.lt.s32.totalorder %s18, 1
      %s327 = scalar_select %p326, %s18, 1
      %s328 = scalar_lea.vmem %s6, %s327
      %v330 = vld [vmem:[%s309] sm:$0xff]
      %v331 = vld [vmem:[%s309 + $0x8] sm:$0xff]
      %v332 = vld [vmem:[%s314] sm:$0xff]
      %v333 = vld [vmem:[%s314 + $0x8] sm:$0xff]
      %vm334 = vcmask 64512
      %v336 = vsel %vm334, %v330, 0
      %v339 = vsel %vm334, %v331, 0
      %341 = vmatpush.msra.mxu0 0.0
      %342 = vmatpush.msra.mxu0 0.0
      %343 = vmatpush.msra.mxu0 0.0
      %344 = vmatpush.msra.mxu0 0.0
      %345 = vmatpush.msra.mxu0 0.0
      %346 = vmatpush.msra.mxu0 0.0
      %347 = vmatpush.msra.mxu0 0.0
      %348 = vmatpush.msra.mxu0 0.0
      %349 = vmatpush.msra.mxu0 0.0
      %350 = vmatpush.msra.mxu0 0.0
      %351 = vmatpush.msra.mxu0 0.0
      %352 = vmatpush.msra.mxu0 0.0
      %353 = vmatpush.msra.mxu0 0.0
      %354 = vmatpush.msra.mxu0 0.0
      %355 = vmatpush.msra.mxu0 0.0
      %356 = vmatpush.msra.mxu0 %v332
      %357 = vmatmul.f32.gmra.mxu0 %v336
      %v358 = vpop.f32.mrf.mxu0
      %v359 = vadd.f32 0.0, %v358
      %360 = vmatmul.f32.gmra.mxu0 %v339
      %v361 = vpop.f32.mrf.mxu0
      %v362 = vadd.f32 0.0, %v361
      %363 = vdwg.mxu0
      %364 = vmatpush.msra.mxu0 0.0
      %365 = vmatpush.msra.mxu0 0.0
      %366 = vmatpush.msra.mxu0 0.0
      %367 = vmatpush.msra.mxu0 0.0
      %368 = vmatpush.msra.mxu0 0.0
      %369 = vmatpush.msra.mxu0 0.0
      %370 = vmatpush.msra.mxu0 0.0
      %371 = vmatpush.msra.mxu0 0.0
      %372 = vmatpush.msra.mxu0 0.0
      %373 = vmatpush.msra.mxu0 0.0
      %374 = vmatpush.msra.mxu0 0.0
      %375 = vmatpush.msra.mxu0 0.0
      %376 = vmatpush.msra.mxu0 0.0
      %377 = vmatpush.msra.mxu0 0.0
      %378 = vmatpush.msra.mxu0 0.0
      %379 = vmatpush.msra.mxu0 %v333
      %380 = vmatmul.f32.gmra.mxu0 %v336
      %v381 = vpop.f32.mrf.mxu0
      %v382 = vadd.f32 0.0, %v381
      %383 = vmatmul.f32.gmra.mxu0 %v339
      %v384 = vpop.f32.mrf.mxu0
      %v385 = vadd.f32 0.0, %v384
      %386 = vdwg.mxu0
      %v387 = vpack.c.bf16 %v362, %v359
      %v388 = vld [vmem:[%s304] sm:$0xf]
      %v389 = vld [vmem:[%s304 + $0x4] sm:$0xf]
      %v392 = vunpack.c.l.b16 %v388
      %v393 = vunpack.c.l.b16 %v389
      %v394 = vpack.c.b16 %v393, %v392
      %vm395 = vcmask 130048
      %v397 = vsel %vm395, %v394, 0
      %399 = vmatpush.bf16.msra.mxu0 0
      %400 = vmatpush.bf16.msra.mxu0 0
      %401 = vmatpush.bf16.msra.mxu0 0
      %402 = vmatpush.bf16.msra.mxu0 0
      %403 = vmatpush.bf16.msra.mxu0 0
      %404 = vmatpush.bf16.msra.mxu0 0
      %405 = vmatpush.bf16.msra.mxu0 0
      %406 = vmatpush.bf16.msra.mxu0 %v387
      %407 = vmatmul.bf16.gmra.mxu0 %v397
      %v408 = vpop.f32.mrf.mxu0
      %v409 = vadd.f32 %v382, %v408
      %v410 = vpop.f32.mrf.mxu0
      %v411 = vadd.f32 %v385, %v410
      %412 = vdwg.mxu0
      %v413 = vld [vmem:[%s317] sm:$0x1]
      %v415 = vperm.slane %v413, 0
      %v417 = vadd.f32 %v409, %v415
      %v418 = vadd.f32 %v411, %v415
      %v419 = vmax.f32 %v417, 0.0
      %v420 = vmax.f32 %v418, 0.0
      %421 = vst [vmem:[%s325] sm:$0xff] %v419
      %422 = vst [vmem:[%s325 + $0x8] sm:$0xff] %v420
      %v423 = vld [vmem:[%s320] sm:$0x1]
      %424 = vmatpush.xpose.msra.mxu0 0.0
      %425 = vmatpush.xpose.msra.mxu0 0.0
      %426 = vmatpush.xpose.msra.mxu0 0.0
      %427 = vmatpush.xpose.msra.mxu0 0.0
      %428 = vmatpush.xpose.msra.mxu0 0.0
      %429 = vmatpush.xpose.msra.mxu0 0.0
      %430 = vmatpush.xpose.msra.mxu0 0.0
      %431 = vmatpush.xpose.msra.mxu0 0.0
      %432 = vmatpush.xpose.msra.mxu0 0.0
      %433 = vmatpush.xpose.msra.mxu0 0.0
      %434 = vmatpush.xpose.msra.mxu0 0.0
      %435 = vmatpush.xpose.msra.mxu0 0.0
      %436 = vmatpush.xpose.msra.mxu0 0.0
      %437 = vmatpush.xpose.msra.mxu0 0.0
      %438 = vmatpush.xpose.msra.mxu0 %v420
      %439 = vmatpush.xpose.msra.mxu0 %v419
      %440 = vmatmul.f32.gmra.mxu0 %v423
      %v441 = vpop.f32.mrf.mxu0
      %v442 = vadd.f32 0.0, %v441
      %443 = vdwg.mxu0
      %vm444 = vcmask 122880
      %445 = vst.msk [vmem:[%s328] sm:$0x1] %vm444, %v442
      %p446 = scmp.lt.s32.totalorder %s18, 1
      %s447 = scalar_select %p446, %s18, 1
      %s448 = smul.addr %s447, 2
      %s449 = smul.addr %s448, 8
      %s450 = scalar_lea.vmem %s5, %s449
      %p451 = scmp.lt.s32.totalorder %s18, 1
      %s452 = scalar_select %p451, %s18, 1
      %s453 = scalar_lea.vmem %s6, %s452
      // Predicated region
      $region41: #{mmgnn_forward.2} parent=39 // pred_check
        %p454 = pneg %p166
      $region42: #{mmgnn_forward.2} parent=39 // pred_check_branch
        %456 = sbr.rel (%p454) target = $region44
      $region43: #{mmgnn_forward.2} parent=39 // pred_region
        _
      $region44: #{mmgnn_forward.2} parent=39 // pred_fallthru
        _
      // Predicated region
      $region45: #{mmgnn_forward.2} parent=39 // pred_check
        %p457 = pneg %p192
      $region46: #{mmgnn_forward.2} parent=39 // pred_check_branch
        %459 = sbr.rel (%p457) target = $region48
      $region47: #{mmgnn_forward.2} parent=39 // pred_region
        _
      $region48: #{mmgnn_forward.2} parent=39 // pred_fallthru
        _
    $region40: #{mmgnn_forward.2} parent=5 // pred_fallthru
      _
    %p460 = scmp.le.s32.totalorder 2, %s13
    // Predicated region
    $region49: #{mmgnn_forward.2} parent=5 // pred_check
      %p461 = pneg %p460
    $region50: #{mmgnn_forward.2} parent=5 // pred_check_branch
      %463 = sbr.rel (%p461) target = $region52
    $region51: #{mmgnn_forward.2} parent=5 // pred_region
      %s464 = ssub.s32 %s13, 2
      // Predicated region
      $region53: #{mmgnn_forward.2} parent=51 // pred_check
        %p465 = pneg %p172
      $region54: #{mmgnn_forward.2} parent=51 // pred_check_branch
        %467 = sbr.rel (%p465) target = $region56
      $region55: #{mmgnn_forward.2} parent=51 // pred_region
        %p468 = scmp.lt.s32.totalorder %s19, 1
        %s469 = scalar_select %p468, %s19, 1
        %s470 = smul.addr %s469, 2
        %s471 = smul.addr %s470, 8
        %s472 = scalar_lea.vmem %s5, %s471
      $region56: #{mmgnn_forward.2} parent=51 // pred_fallthru
        _
      // Predicated region
      $region57: #{mmgnn_forward.2} parent=51 // pred_check
        %p473 = pneg %p198
      $region58: #{mmgnn_forward.2} parent=51 // pred_check_branch
        %475 = sbr.rel (%p473) target = $region60
      $region59: #{mmgnn_forward.2} parent=51 // pred_region
        %p476 = scmp.lt.s32.totalorder %s19, 1
        %s477 = scalar_select %p476, %s19, 1
        %s478 = scalar_lea.vmem %s6, %s477
      $region60: #{mmgnn_forward.2} parent=51 // pred_fallthru
        _
    $region52: #{mmgnn_forward.2} parent=5 // pred_fallthru
      _
  $region6: #{mmgnn_forward.2} parent=0 // loop_footer
    %s17 = sadd.s32 1, %s13
  $region7: #{mmgnn_forward.2} parent=0 // loop_footer_branch
    %12 = sbr.rel target = $region3
  $region8: #{mmgnn_forward.2} parent=0 // loop_exit
    _

// kernel: mmgnn_forward.3
$region0: #{mmgnn_forward.3}
  #allocation0 [shape = 'u32[]', space=smem, size = 0x4, offset = 0x4, fixed_abs, tag = 'smem constant byte address 0x4 - core index']
  #allocation1 [shape = 'u32[72,128]{1,0:T(1,128)}', space=vmem, size = 0x9000, scoped, tag = 'internal scratch']
  %s0 = inlined_call_operand.vmem [shape: bf16[2,16,16], index: 0, kind: input, shape index: {}]
  %s1 = inlined_call_operand.vmem [shape: f32[2,16,128], index: 1, kind: input, shape index: {}]
  %s2 = inlined_call_operand.vmem [shape: f32[16,1], index: 2, kind: input, shape index: {}]
  %s3 = inlined_call_operand.vmem [shape: f32[16,1], index: 3, kind: input, shape index: {}]
  %s4 = inlined_call_operand.vmem [shape: f32[2,128,256], index: 4, kind: input, shape index: {}]
  %s5 = inlined_call_operand.vmem [shape: f32[2,1,128], index: 5, kind: input, shape index: {}]
  %s6 = inlined_call_operand.vmem [shape: f32[4,128,3], index: 6, kind: input, shape index: {}]
  %s7 = inlined_call_operand.vmem [shape: f32[1,3], index: 7, kind: input, shape index: {}]
  %s8 = inlined_call_operand.hbm [shape: f32[1,3], index: 8, kind: output, shape index: {}]
  %s9 = sld [smem:[#allocation0]]
  $region42: #{mmgnn_forward.3} parent=0
    _
  %s11 = ssub.s32 1, %s9
  %s12 = scalar_select 0, %s11, %s9
  $region1: #{mmgnn_forward.3} parent=0
    #allocation2 [shape = 'u8[512]{0}', space=vmem, size = 0x400, scoped, tag = 'output window, operand 0, single buffered']
    #allocation3 [shape = 's32[1]{0}', space=sflag, size = 0x4, scoped, tag = 'scoped memory for mmgnn_forward.3']
    %13 = vsyncpa [#allocation3], 0
    // Predicated region
    $region2: #{mmgnn_forward.3} parent=1 // pred_check
      _
    $region3: #{mmgnn_forward.3} parent=1 // pred_check_branch
      %15 = sbr.rel (0) target = $region5
    $region4: #{mmgnn_forward.3} parent=1 // pred_region
      _
    $region5: #{mmgnn_forward.3} parent=1 // pred_fallthru
      _
    // Predicated region
    $region6: #{mmgnn_forward.3} parent=1 // pred_check
      _
    $region7: #{mmgnn_forward.3} parent=1 // pred_check_branch
      %17 = sbr.rel (0) target = $region9
    $region8: #{mmgnn_forward.3} parent=1 // pred_region
      _
    $region9: #{mmgnn_forward.3} parent=1 // pred_fallthru
      _
    // Predicated region
    $region10: #{mmgnn_forward.3} parent=1 // pred_check
      _
    $region11: #{mmgnn_forward.3} parent=1 // pred_check_branch
      %19 = sbr.rel (0) target = $region13
    $region12: #{mmgnn_forward.3} parent=1 // pred_region
      _
    $region13: #{mmgnn_forward.3} parent=1 // pred_fallthru
      _
    // Predicated region
    $region14: #{mmgnn_forward.3} parent=1 // pred_check
      _
    $region15: #{mmgnn_forward.3} parent=1 // pred_check_branch
      %21 = sbr.rel (0) target = $region17
    $region16: #{mmgnn_forward.3} parent=1 // pred_region
      _
    $region17: #{mmgnn_forward.3} parent=1 // pred_fallthru
      _
    // Predicated region
    $region18: #{mmgnn_forward.3} parent=1 // pred_check
      _
    $region19: #{mmgnn_forward.3} parent=1 // pred_check_branch
      %23 = sbr.rel (0) target = $region21
    $region20: #{mmgnn_forward.3} parent=1 // pred_region
      _
    $region21: #{mmgnn_forward.3} parent=1 // pred_fallthru
      _
    // Predicated region
    $region22: #{mmgnn_forward.3} parent=1 // pred_check
      _
    $region23: #{mmgnn_forward.3} parent=1 // pred_check_branch
      %25 = sbr.rel (0) target = $region25
    $region24: #{mmgnn_forward.3} parent=1 // pred_region
      _
    $region25: #{mmgnn_forward.3} parent=1 // pred_fallthru
      _
    // Predicated region
    $region26: #{mmgnn_forward.3} parent=1 // pred_check
      _
    $region27: #{mmgnn_forward.3} parent=1 // pred_check_branch
      %27 = sbr.rel (0) target = $region29
    $region28: #{mmgnn_forward.3} parent=1 // pred_region
      _
    $region29: #{mmgnn_forward.3} parent=1 // pred_fallthru
      _
    // Predicated region
    $region30: #{mmgnn_forward.3} parent=1 // pred_check
      _
    $region31: #{mmgnn_forward.3} parent=1 // pred_check_branch
      %29 = sbr.rel (0) target = $region33
    $region32: #{mmgnn_forward.3} parent=1 // pred_region
      _
    $region33: #{mmgnn_forward.3} parent=1 // pred_fallthru
      _
    %v31 = vld [vmem:[%s2] sm:$0xff]
    %v32 = vld [vmem:[%s2 + $0x8] sm:$0xff]
    %v33 = vld [vmem:[%s3] sm:$0xff]
    %v34 = vld [vmem:[%s3 + $0x8] sm:$0xff]
    %v35 = vld [vmem:[%s7] sm:$0x1]
    %v36 = vld [vmem:[%s1] sm:$0xff]
    %v37 = vld [vmem:[%s1 + $0x8] sm:$0xff]
    %39 = vset.pattern.permute.xlu0 0
    %40 = vperm.xlu0 %39, %v31
    %v41 = vpop.permute.xlu0 %40
    %44 = vset.pattern.permute.xlu0 0
    %45 = vperm.xlu0 %44, %v32
    %v46 = vpop.permute.xlu0 %45
    %v48 = vmul.f32 %v36, %v41
    %v49 = vmul.f32 %v37, %v46
    %v50 = vld [vmem:[%s4] sm:$0xff]
    %v51 = vld [vmem:[%s4 + $0x8] sm:$0xff]
    %v52 = vld [vmem:[%s4 + $0x10] sm:$0xff]
    %v53 = vld [vmem:[%s4 + $0x18] sm:$0xff]
    %v54 = vld [vmem:[%s4 + $0x20] sm:$0xff]
    %v55 = vld [vmem:[%s4 + $0x28] sm:$0xff]
    %v56 = vld [vmem:[%s4 + $0x30] sm:$0xff]
    %v57 = vld [vmem:[%s4 + $0x38] sm:$0xff]
    %v58 = vld [vmem:[%s4 + $0x40] sm:$0xff]
    %v59 = vld [vmem:[%s4 + $0x48] sm:$0xff]
    %v60 = vld [vmem:[%s4 + $0x50] sm:$0xff]
    %v61 = vld [vmem:[%s4 + $0x58] sm:$0xff]
    %v62 = vld [vmem:[%s4 + $0x60] sm:$0xff]
    %v63 = vld [vmem:[%s4 + $0x68] sm:$0xff]
    %v64 = vld [vmem:[%s4 + $0x70] sm:$0xff]
    %v65 = vld [vmem:[%s4 + $0x78] sm:$0xff]
    %v66 = vld [vmem:[%s4 + $0x80] sm:$0xff]
    %v67 = vld [vmem:[%s4 + $0x88] sm:$0xff]
    %v68 = vld [vmem:[%s4 + $0x90] sm:$0xff]
    %v69 = vld [vmem:[%s4 + $0x98] sm:$0xff]
    %v70 = vld [vmem:[%s4 + $0xa0] sm:$0xff]
    %v71 = vld [vmem:[%s4 + $0xa8] sm:$0xff]
    %v72 = vld [vmem:[%s4 + $0xb0] sm:$0xff]
    %v73 = vld [vmem:[%s4 + $0xb8] sm:$0xff]
    %v74 = vld [vmem:[%s4 + $0xc0] sm:$0xff]
    %v75 = vld [vmem:[%s4 + $0xc8] sm:$0xff]
    %v76 = vld [vmem:[%s4 + $0xd0] sm:$0xff]
    %v77 = vld [vmem:[%s4 + $0xd8] sm:$0xff]
    %v78 = vld [vmem:[%s4 + $0xe0] sm:$0xff]
    %v79 = vld [vmem:[%s4 + $0xe8] sm:$0xff]
    %v80 = vld [vmem:[%s4 + $0xf0] sm:$0xff]
    %v81 = vld [vmem:[%s4 + $0xf8] sm:$0xff]
    %82 = vmatpush.msra.mxu0 %v80
    %83 = vmatpush.msra.mxu0 %v78
    %84 = vmatpush.msra.mxu0 %v76
    %85 = vmatpush.msra.mxu0 %v74
    %86 = vmatpush.msra.mxu0 %v72
    %87 = vmatpush.msra.mxu0 %v70
    %88 = vmatpush.msra.mxu0 %v68
    %89 = vmatpush.msra.mxu0 %v66
    %90 = vmatpush.msra.mxu0 %v64
    %91 = vmatpush.msra.mxu0 %v62
    %92 = vmatpush.msra.mxu0 %v60
    %93 = vmatpush.msra.mxu0 %v58
    %94 = vmatpush.msra.mxu0 %v56
    %95 = vmatpush.msra.mxu0 %v54
    %96 = vmatpush.msra.mxu0 %v52
    %97 = vmatpush.msra.mxu0 %v50
    %98 = vmatmul.f32.gmra.mxu0 %v48
    %v99 = vpop.f32.mrf.mxu0
    %v100 = vadd.f32 0.0, %v99
    %101 = vmatmul.f32.gmra.mxu0 %v49
    %v102 = vpop.f32.mrf.mxu0
    %v103 = vadd.f32 0.0, %v102
    %104 = vdwg.mxu0
    %105 = vmatpush.msra.mxu0 %v81
    %106 = vmatpush.msra.mxu0 %v79
    %107 = vmatpush.msra.mxu0 %v77
    %108 = vmatpush.msra.mxu0 %v75
    %109 = vmatpush.msra.mxu0 %v73
    %110 = vmatpush.msra.mxu0 %v71
    %111 = vmatpush.msra.mxu0 %v69
    %112 = vmatpush.msra.mxu0 %v67
    %113 = vmatpush.msra.mxu0 %v65
    %114 = vmatpush.msra.mxu0 %v63
    %115 = vmatpush.msra.mxu0 %v61
    %116 = vmatpush.msra.mxu0 %v59
    %117 = vmatpush.msra.mxu0 %v57
    %118 = vmatpush.msra.mxu0 %v55
    %119 = vmatpush.msra.mxu0 %v53
    %120 = vmatpush.msra.mxu0 %v51
    %121 = vmatmul.f32.gmra.mxu0 %v48
    %v122 = vpop.f32.mrf.mxu0
    %v123 = vadd.f32 0.0, %v122
    %124 = vmatmul.f32.gmra.mxu0 %v49
    %v125 = vpop.f32.mrf.mxu0
    %v126 = vadd.f32 0.0, %v125
    %127 = vdwg.mxu0
    %v128 = vpack.c.bf16 %v103, %v100
    %v129 = vld [vmem:[%s0] sm:$0xf]
    %v130 = vld [vmem:[%s0 + $0x4] sm:$0xf]
    %v133 = vunpack.c.l.b16 %v129
    %v134 = vunpack.c.l.b16 %v130
    %v135 = vpack.c.b16 %v134, %v133
    %vm136 = vcmask 130048
    %v138 = vsel %vm136, %v135, 0
    %140 = vmatpush.bf16.msra.mxu0 0
    %141 = vmatpush.bf16.msra.mxu0 0
    %142 = vmatpush.bf16.msra.mxu0 0
    %143 = vmatpush.bf16.msra.mxu0 0
    %144 = vmatpush.bf16.msra.mxu0 0
    %145 = vmatpush.bf16.msra.mxu0 0
    %146 = vmatpush.bf16.msra.mxu0 0
    %147 = vmatpush.bf16.msra.mxu0 %v128
    %148 = vmatmul.bf16.gmra.mxu0 %v138
    %v149 = vpop.f32.mrf.mxu0
    %v150 = vadd.f32 %v123, %v149
    %v151 = vpop.f32.mrf.mxu0
    %v152 = vadd.f32 %v126, %v151
    %153 = vdwg.mxu0
    %v154 = vld [vmem:[%s5] sm:$0x1]
    %v156 = vperm.slane %v154, 0
    %v158 = vadd.f32 %v150, %v156
    %v159 = vadd.f32 %v152, %v156
    %v160 = vmax.f32 %v158, 0.0
    %v161 = vmax.f32 %v159, 0.0
    %163 = vset.pattern.permute.xlu0 0
    %164 = vperm.xlu0 %163, %v33
    %v165 = vpop.permute.xlu0 %164
    %168 = vset.pattern.permute.xlu0 0
    %169 = vperm.xlu0 %168, %v34
    %v170 = vpop.permute.xlu0 %169
    %v172 = vmul.f32 %v160, %v165
    %v173 = vmul.f32 %v161, %v170
    %v174 = vmax.f32 %v172, %v173
    %v175 = vrot.slane %v174, 4
    %v176 = vmax.f32 %v174, %v175
    %v177 = vrot.slane %v176, 2
    %v178 = vmax.f32 %v176, %v177
    %v179 = vrot.slane %v178, 1
    %v180 = vmax.f32 %v178, %v179
    %v181 = vadd.f32 %v172, %v173
    %v182 = vrot.slane %v181, 4
    %v183 = vadd.f32 %v181, %v182
    %v184 = vrot.slane %v183, 2
    %v185 = vadd.f32 %v183, %v184
    %v186 = vrot.slane %v185, 1
    %v187 = vadd.f32 %v185, %v186
    %v188 = vmul.f32 %v187, 0.07692308
    %v189 = vld [vmem:[%s6] sm:$0xff]
    %v190 = vld [vmem:[%s6 + $0x8] sm:$0xff]
    %v191 = vld [vmem:[%s6 + $0x10] sm:$0xff]
    %v192 = vld [vmem:[%s6 + $0x18] sm:$0xff]
    %v193 = vld [vmem:[%s6 + $0x20] sm:$0xff]
    %v194 = vld [vmem:[%s6 + $0x28] sm:$0xff]
    %v195 = vld [vmem:[%s6 + $0x30] sm:$0xff]
    %v196 = vld [vmem:[%s6 + $0x38] sm:$0xff]
    %v197 = vld [vmem:[%s6 + $0x40] sm:$0xff]
    %v198 = vld [vmem:[%s6 + $0x48] sm:$0xff]
    %v199 = vld [vmem:[%s6 + $0x50] sm:$0xff]
    %v200 = vld [vmem:[%s6 + $0x58] sm:$0xff]
    %v201 = vld [vmem:[%s6 + $0x60] sm:$0xff]
    %v202 = vld [vmem:[%s6 + $0x68] sm:$0xff]
    %v203 = vld [vmem:[%s6 + $0x70] sm:$0xff]
    %v204 = vld [vmem:[%s6 + $0x78] sm:$0xff]
    %205 = vmatpush.msra.mxu0 %v204
    %206 = vmatpush.msra.mxu0 %v203
    %207 = vmatpush.msra.mxu0 %v202
    %208 = vmatpush.msra.mxu0 %v201
    %209 = vmatpush.msra.mxu0 %v200
    %210 = vmatpush.msra.mxu0 %v199
    %211 = vmatpush.msra.mxu0 %v198
    %212 = vmatpush.msra.mxu0 %v197
    %213 = vmatpush.msra.mxu0 %v196
    %214 = vmatpush.msra.mxu0 %v195
    %215 = vmatpush.msra.mxu0 %v194
    %216 = vmatpush.msra.mxu0 %v193
    %217 = vmatpush.msra.mxu0 %v192
    %218 = vmatpush.msra.mxu0 %v191
    %219 = vmatpush.msra.mxu0 %v190
    %220 = vmatpush.msra.mxu0 %v189
    %221 = vmatmul.f32.gmra.mxu0 %v180
    %v222 = vpop.f32.mrf.mxu0
    %v223 = vadd.f32 0.0, %v222
    %224 = vdwg.mxu0
    %v225 = vadd.f32 %v35, %v223
    %s226 = scalar_lea.vmem %s6, 128
    %v227 = vld [vmem:[%s226] sm:$0xff]
    %v228 = vld [vmem:[%s226 + $0x8] sm:$0xff]
    %v229 = vld [vmem:[%s226 + $0x10] sm:$0xff]
    %v230 = vld [vmem:[%s226 + $0x18] sm:$0xff]
    %v231 = vld [vmem:[%s226 + $0x20] sm:$0xff]
    %v232 = vld [vmem:[%s226 + $0x28] sm:$0xff]
    %v233 = vld [vmem:[%s226 + $0x30] sm:$0xff]
    %v234 = vld [vmem:[%s226 + $0x38] sm:$0xff]
    %v235 = vld [vmem:[%s226 + $0x40] sm:$0xff]
    %v236 = vld [vmem:[%s226 + $0x48] sm:$0xff]
    %v237 = vld [vmem:[%s226 + $0x50] sm:$0xff]
    %v238 = vld [vmem:[%s226 + $0x58] sm:$0xff]
    %v239 = vld [vmem:[%s226 + $0x60] sm:$0xff]
    %v240 = vld [vmem:[%s226 + $0x68] sm:$0xff]
    %v241 = vld [vmem:[%s226 + $0x70] sm:$0xff]
    %v242 = vld [vmem:[%s226 + $0x78] sm:$0xff]
    %243 = vmatpush.msra.mxu0 %v242
    %244 = vmatpush.msra.mxu0 %v241
    %245 = vmatpush.msra.mxu0 %v240
    %246 = vmatpush.msra.mxu0 %v239
    %247 = vmatpush.msra.mxu0 %v238
    %248 = vmatpush.msra.mxu0 %v237
    %249 = vmatpush.msra.mxu0 %v236
    %250 = vmatpush.msra.mxu0 %v235
    %251 = vmatpush.msra.mxu0 %v234
    %252 = vmatpush.msra.mxu0 %v233
    %253 = vmatpush.msra.mxu0 %v232
    %254 = vmatpush.msra.mxu0 %v231
    %255 = vmatpush.msra.mxu0 %v230
    %256 = vmatpush.msra.mxu0 %v229
    %257 = vmatpush.msra.mxu0 %v228
    %258 = vmatpush.msra.mxu0 %v227
    %259 = vmatmul.f32.gmra.mxu0 %v188
    %v260 = vpop.f32.mrf.mxu0
    %v261 = vadd.f32 0.0, %v260
    %262 = vdwg.mxu0
    %v263 = vadd.f32 %v225, %v261
    %s264 = scalar_lea.vmem %s1, 16
    %v265 = vld [vmem:[%s264] sm:$0xff]
    %v266 = vld [vmem:[%s264 + $0x8] sm:$0xff]
    %v267 = vmul.f32 %v265, %v41
    %v268 = vmul.f32 %v266, %v46
    %s269 = scalar_lea.vmem %s4, 256
    %v270 = vld [vmem:[%s269] sm:$0xff]
    %v271 = vld [vmem:[%s269 + $0x8] sm:$0xff]
    %v272 = vld [vmem:[%s269 + $0x10] sm:$0xff]
    %v273 = vld [vmem:[%s269 + $0x18] sm:$0xff]
    %v274 = vld [vmem:[%s269 + $0x20] sm:$0xff]
    %v275 = vld [vmem:[%s269 + $0x28] sm:$0xff]
    %v276 = vld [vmem:[%s269 + $0x30] sm:$0xff]
    %v277 = vld [vmem:[%s269 + $0x38] sm:$0xff]
    %v278 = vld [vmem:[%s269 + $0x40] sm:$0xff]
    %v279 = vld [vmem:[%s269 + $0x48] sm:$0xff]
    %v280 = vld [vmem:[%s269 + $0x50] sm:$0xff]
    %v281 = vld [vmem:[%s269 + $0x58] sm:$0xff]
    %v282 = vld [vmem:[%s269 + $0x60] sm:$0xff]
    %v283 = vld [vmem:[%s269 + $0x68] sm:$0xff]
    %v284 = vld [vmem:[%s269 + $0x70] sm:$0xff]
    %v285 = vld [vmem:[%s269 + $0x78] sm:$0xff]
    %v286 = vld [vmem:[%s269 + $0x80] sm:$0xff]
    %v287 = vld [vmem:[%s269 + $0x88] sm:$0xff]
    %v288 = vld [vmem:[%s269 + $0x90] sm:$0xff]
    %v289 = vld [vmem:[%s269 + $0x98] sm:$0xff]
    %v290 = vld [vmem:[%s269 + $0xa0] sm:$0xff]
    %v291 = vld [vmem:[%s269 + $0xa8] sm:$0xff]
    %v292 = vld [vmem:[%s269 + $0xb0] sm:$0xff]
    %v293 = vld [vmem:[%s269 + $0xb8] sm:$0xff]
    %v294 = vld [vmem:[%s269 + $0xc0] sm:$0xff]
    %v295 = vld [vmem:[%s269 + $0xc8] sm:$0xff]
    %v296 = vld [vmem:[%s269 + $0xd0] sm:$0xff]
    %v297 = vld [vmem:[%s269 + $0xd8] sm:$0xff]
    %v298 = vld [vmem:[%s269 + $0xe0] sm:$0xff]
    %v299 = vld [vmem:[%s269 + $0xe8] sm:$0xff]
    %v300 = vld [vmem:[%s269 + $0xf0] sm:$0xff]
    %v301 = vld [vmem:[%s269 + $0xf8] sm:$0xff]
    %302 = vmatpush.msra.mxu0 %v300
    %303 = vmatpush.msra.mxu0 %v298
    %304 = vmatpush.msra.mxu0 %v296
    %305 = vmatpush.msra.mxu0 %v294
    %306 = vmatpush.msra.mxu0 %v292
    %307 = vmatpush.msra.mxu0 %v290
    %308 = vmatpush.msra.mxu0 %v288
    %309 = vmatpush.msra.mxu0 %v286
    %310 = vmatpush.msra.mxu0 %v284
    %311 = vmatpush.msra.mxu0 %v282
    %312 = vmatpush.msra.mxu0 %v280
    %313 = vmatpush.msra.mxu0 %v278
    %314 = vmatpush.msra.mxu0 %v276
    %315 = vmatpush.msra.mxu0 %v274
    %316 = vmatpush.msra.mxu0 %v272
    %317 = vmatpush.msra.mxu0 %v270
    %318 = vmatmul.f32.gmra.mxu0 %v267
    %v319 = vpop.f32.mrf.mxu0
    %v320 = vadd.f32 0.0, %v319
    %321 = vmatmul.f32.gmra.mxu0 %v268
    %v322 = vpop.f32.mrf.mxu0
    %v323 = vadd.f32 0.0, %v322
    %324 = vdwg.mxu0
    %325 = vmatpush.msra.mxu0 %v301
    %326 = vmatpush.msra.mxu0 %v299
    %327 = vmatpush.msra.mxu0 %v297
    %328 = vmatpush.msra.mxu0 %v295
    %329 = vmatpush.msra.mxu0 %v293
    %330 = vmatpush.msra.mxu0 %v291
    %331 = vmatpush.msra.mxu0 %v289
    %332 = vmatpush.msra.mxu0 %v287
    %333 = vmatpush.msra.mxu0 %v285
    %334 = vmatpush.msra.mxu0 %v283
    %335 = vmatpush.msra.mxu0 %v281
    %336 = vmatpush.msra.mxu0 %v279
    %337 = vmatpush.msra.mxu0 %v277
    %338 = vmatpush.msra.mxu0 %v275
    %339 = vmatpush.msra.mxu0 %v273
    %340 = vmatpush.msra.mxu0 %v271
    %341 = vmatmul.f32.gmra.mxu0 %v267
    %v342 = vpop.f32.mrf.mxu0
    %v343 = vadd.f32 0.0, %v342
    %344 = vmatmul.f32.gmra.mxu0 %v268
    %v345 = vpop.f32.mrf.mxu0
    %v346 = vadd.f32 0.0, %v345
    %347 = vdwg.mxu0
    %v348 = vpack.c.bf16 %v323, %v320
    %s349 = scalar_lea.vmem %s0, 8
    %v350 = vld [vmem:[%s349] sm:$0xf]
    %v351 = vld [vmem:[%s349 + $0x4] sm:$0xf]
    %v354 = vunpack.c.l.b16 %v350
    %v355 = vunpack.c.l.b16 %v351
    %v356 = vpack.c.b16 %v355, %v354
    %v358 = vsel %vm136, %v356, 0
    %360 = vmatpush.bf16.msra.mxu0 0
    %361 = vmatpush.bf16.msra.mxu0 0
    %362 = vmatpush.bf16.msra.mxu0 0
    %363 = vmatpush.bf16.msra.mxu0 0
    %364 = vmatpush.bf16.msra.mxu0 0
    %365 = vmatpush.bf16.msra.mxu0 0
    %366 = vmatpush.bf16.msra.mxu0 0
    %367 = vmatpush.bf16.msra.mxu0 %v348
    %368 = vmatmul.bf16.gmra.mxu0 %v358
    %v369 = vpop.f32.mrf.mxu0
    %v370 = vadd.f32 %v343, %v369
    %v371 = vpop.f32.mrf.mxu0
    %v372 = vadd.f32 %v346, %v371
    %373 = vdwg.mxu0
    %s374 = scalar_lea.vmem %s5, 1
    %v375 = vld [vmem:[%s374] sm:$0x1]
    %v377 = vperm.slane %v375, 0
    %v379 = vadd.f32 %v370, %v377
    %v380 = vadd.f32 %v372, %v377
    %v381 = vmax.f32 %v379, 0.0
    %v382 = vmax.f32 %v380, 0.0
    %v383 = vmul.f32 %v381, %v165
    %v384 = vmul.f32 %v382, %v170
    %v385 = vmax.f32 %v383, %v384
    %v386 = vrot.slane %v385, 4
    %v387 = vmax.f32 %v385, %v386
    %v388 = vrot.slane %v387, 2
    %v389 = vmax.f32 %v387, %v388
    %v390 = vrot.slane %v389, 1
    %v391 = vmax.f32 %v389, %v390
    %v392 = vadd.f32 %v383, %v384
    %v393 = vrot.slane %v392, 4
    %v394 = vadd.f32 %v392, %v393
    %v395 = vrot.slane %v394, 2
    %v396 = vadd.f32 %v394, %v395
    %v397 = vrot.slane %v396, 1
    %v398 = vadd.f32 %v396, %v397
    %v399 = vmul.f32 %v398, 0.07692308
    %s400 = scalar_lea.vmem %s6, 256
    %v401 = vld [vmem:[%s400] sm:$0xff]
    %v402 = vld [vmem:[%s400 + $0x8] sm:$0xff]
    %v403 = vld [vmem:[%s400 + $0x10] sm:$0xff]
    %v404 = vld [vmem:[%s400 + $0x18] sm:$0xff]
    %v405 = vld [vmem:[%s400 + $0x20] sm:$0xff]
    %v406 = vld [vmem:[%s400 + $0x28] sm:$0xff]
    %v407 = vld [vmem:[%s400 + $0x30] sm:$0xff]
    %v408 = vld [vmem:[%s400 + $0x38] sm:$0xff]
    %v409 = vld [vmem:[%s400 + $0x40] sm:$0xff]
    %v410 = vld [vmem:[%s400 + $0x48] sm:$0xff]
    %v411 = vld [vmem:[%s400 + $0x50] sm:$0xff]
    %v412 = vld [vmem:[%s400 + $0x58] sm:$0xff]
    %v413 = vld [vmem:[%s400 + $0x60] sm:$0xff]
    %v414 = vld [vmem:[%s400 + $0x68] sm:$0xff]
    %v415 = vld [vmem:[%s400 + $0x70] sm:$0xff]
    %v416 = vld [vmem:[%s400 + $0x78] sm:$0xff]
    %417 = vmatpush.msra.mxu0 %v416
    %418 = vmatpush.msra.mxu0 %v415
    %419 = vmatpush.msra.mxu0 %v414
    %420 = vmatpush.msra.mxu0 %v413
    %421 = vmatpush.msra.mxu0 %v412
    %422 = vmatpush.msra.mxu0 %v411
    %423 = vmatpush.msra.mxu0 %v410
    %424 = vmatpush.msra.mxu0 %v409
    %425 = vmatpush.msra.mxu0 %v408
    %426 = vmatpush.msra.mxu0 %v407
    %427 = vmatpush.msra.mxu0 %v406
    %428 = vmatpush.msra.mxu0 %v405
    %429 = vmatpush.msra.mxu0 %v404
    %430 = vmatpush.msra.mxu0 %v403
    %431 = vmatpush.msra.mxu0 %v402
    %432 = vmatpush.msra.mxu0 %v401
    %433 = vmatmul.f32.gmra.mxu0 %v391
    %v434 = vpop.f32.mrf.mxu0
    %v435 = vadd.f32 0.0, %v434
    %436 = vdwg.mxu0
    %v437 = vadd.f32 %v263, %v435
    %s438 = scalar_lea.vmem %s6, 384
    %v439 = vld [vmem:[%s438] sm:$0xff]
    %v440 = vld [vmem:[%s438 + $0x8] sm:$0xff]
    %v441 = vld [vmem:[%s438 + $0x10] sm:$0xff]
    %v442 = vld [vmem:[%s438 + $0x18] sm:$0xff]
    %v443 = vld [vmem:[%s438 + $0x20] sm:$0xff]
    %v444 = vld [vmem:[%s438 + $0x28] sm:$0xff]
    %v445 = vld [vmem:[%s438 + $0x30] sm:$0xff]
    %v446 = vld [vmem:[%s438 + $0x38] sm:$0xff]
    %v447 = vld [vmem:[%s438 + $0x40] sm:$0xff]
    %v448 = vld [vmem:[%s438 + $0x48] sm:$0xff]
    %v449 = vld [vmem:[%s438 + $0x50] sm:$0xff]
    %v450 = vld [vmem:[%s438 + $0x58] sm:$0xff]
    %v451 = vld [vmem:[%s438 + $0x60] sm:$0xff]
    %v452 = vld [vmem:[%s438 + $0x68] sm:$0xff]
    %v453 = vld [vmem:[%s438 + $0x70] sm:$0xff]
    %v454 = vld [vmem:[%s438 + $0x78] sm:$0xff]
    %455 = vmatpush.msra.mxu0 %v454
    %456 = vmatpush.msra.mxu0 %v453
    %457 = vmatpush.msra.mxu0 %v452
    %458 = vmatpush.msra.mxu0 %v451
    %459 = vmatpush.msra.mxu0 %v450
    %460 = vmatpush.msra.mxu0 %v449
    %461 = vmatpush.msra.mxu0 %v448
    %462 = vmatpush.msra.mxu0 %v447
    %463 = vmatpush.msra.mxu0 %v446
    %464 = vmatpush.msra.mxu0 %v445
    %465 = vmatpush.msra.mxu0 %v444
    %466 = vmatpush.msra.mxu0 %v443
    %467 = vmatpush.msra.mxu0 %v442
    %468 = vmatpush.msra.mxu0 %v441
    %469 = vmatpush.msra.mxu0 %v440
    %470 = vmatpush.msra.mxu0 %v439
    %471 = vmatmul.f32.gmra.mxu0 %v399
    %v472 = vpop.f32.mrf.mxu0
    %v473 = vadd.f32 0.0, %v472
    %474 = vdwg.mxu0
    %v475 = vadd.f32 %v437, %v473
    %vm476 = vcmask 16384
    %v477 = vsel %vm476, %v475, -inf
    %478 = vmax.xlane.f32.xlu0 %v477
    %v479 = vpop.xlane.xlu0 %478
    %v480 = vsub.f32 %v475, %v479
    %v481 = vmul.f32 %v480, 1.442695
    %v482 = vpow.pop %v481
    %v483 = vsel %vm476, %v482, 0.0
    %484 = vadd.xlane.f32.xlu0 %v483
    %v485 = vpop.xlane.xlu0 %484
    %v486 = vrcp.pop %v485
    %v487 = vmul.f32 %v485, %v486
    %v488 = vsub.f32 1.0, %v487
    %v489 = vmul.f32 %v486, %v488
    %v490 = vadd.f32 %v486, %v489
    %vm491 = vweird.f32 %v485
    %vm492 = vweird.f32 %v486
    %vm493 = vmor %vm491, %vm492
    %v494 = vsel %vm493, %v486, %v490
    %v495 = vand.u32 2147483647, %v485
    %vm496 = vcmp.eq.f32.partialorder %v495, 8.507059e+37
    %v497 = vand.u32 %v485, 2147483648
    %v498 = vor.u32 1.1754944e-38, %v497
    %v499 = vsel %vm496, %v498, %v494
    %v500 = vmul.f32 %v482, %v499
    %501 = vst.msk [vmem:[#allocation2] sm:$0x1] %vm476, %v500
    // Predicated region
    $region34: #{mmgnn_forward.3} parent=1 // pred_check
      _
    $region35: #{mmgnn_forward.3} parent=1 // pred_check_branch
      %503 = sbr.rel (0) target = $region37
    $region36: #{mmgnn_forward.3} parent=1 // pred_region
      %505 = vsyncadd [#allocation3], 0
      %s507 = sshll.u32 [#allocation2], 4
      %s508 = int_to_ptr.vmem [resolvable:$true] %s507
      %s509 = sshll.u32 %s8, 4
      %s510 = int_to_ptr.hbm [resolvable:$true] %s509
      %512 = dma.vmem_to_hbm [thread:$0]  %s508, 16, %s510, [#allocation3]
    $region37: #{mmgnn_forward.3} parent=1 // pred_fallthru
      _
    // Predicated region
    $region38: #{mmgnn_forward.3} parent=1 // pred_check
      _
    $region39: #{mmgnn_forward.3} parent=1 // pred_check_branch
      %514 = sbr.rel (0) target = $region41
    $region40: #{mmgnn_forward.3} parent=1 // pred_region
      %516 = dma.done [#allocation3], 16
    $region41: #{mmgnn_forward.3} parent=1 // pred_fallthru
      _
    %517 = vsyncpa [#allocation3], 1

</llo_original>
